<compile_context>
chip_gen: v5e
topology: v5e:2x2
jax: 0.10.0
libtpu: 0.0.40
codegen_flags: <defaults>
</compile_context>

<pallas_src>
import functools
import math

import jax
import jax.numpy as jnp
from jax import lax
from jax.experimental import pallas as pl
from jax.experimental.pallas import tpu as pltpu

NEG_SLOPE = 0.01   # F.leaky_relu default negative_slope
BN_EPS = 1e-5      # nn.BatchNorm2d default eps


# ----------------------------------------------------------------------------
# Pallas head kernel: leaky_relu -> adaptive_avg_pool2d((1,1)) -> Linear
# ----------------------------------------------------------------------------
def _head_kernel(x_ref, w_ref, b_ref, o_ref, *, negative_slope):
    # x_ref: (bt, HW, C) bf16  trunk features, C on the lane axis
    # w_ref: (C, NP)     bf16  classifier weight (1/HW folded in, lane-padded)
    # b_ref: (1, NP)     f32   classifier bias (lane-padded), VMEM-resident
    # o_ref: (bt, NP)    f32   lane-dense output tile
    x = x_ref[...].astype(jnp.float32)              # upcast: f32 VPU path (v5e-safe)
    x = jnp.where(x >= 0, x, negative_slope * x)    # F.leaky_relu
    pooled = jnp.sum(x, axis=1)                     # sublane-axis reduce -> (bt, C)
    # Linear(512, n_classes): bf16 operands on the MXU, f32 accumulation.
    acc = jnp.dot(pooled.astype(jnp.bfloat16), w_ref[...],
                  preferred_element_type=jnp.float32)
    o_ref[...] = acc + b_ref[...]


def _round_up(n, m):
    return ((n + m - 1) // m) * m


def _pick_batch_tile(batch, hw, c, vmem_budget=16 * 1024 * 1024):
    """Batch tile for the head.  Per-row VMEM cost uses the new layout:
    bf16 activations, C on lanes -> round_up(HW,8) * round_up(C,128) * 2 bytes.
    Cap at 128; when the whole batch would fit one tile but is large, split so
    the ("parallel",) grid has >= 2 steps (v7x dual-TensorCore sharding)."""
    row_bytes = _round_up(hw, 8) * _round_up(c, 128) * 2   # bf16
    cap = max(8, (vmem_budget // (2 * row_bytes)) // 8 * 8)  # double-buffered
    cap = min(cap, 128)
    if batch <= cap:
        if batch > 16:                       # give v7x's 2 TCs something to split
            return int(max(8, _round_up(-(-batch // 2), 8)))
        return int(batch)
    return int(cap)


def resnet18_head_pallas(feat, w_fc, b_fc, negative_slope=NEG_SLOPE):
    """feat: (B, H, W, C) f32 trunk output (NHWC); w_fc: (n_classes, C); b_fc: (n_classes,)."""
    B, H, W, C = feat.shape
    HW = H * W
    n_classes, c_in = w_fc.shape
    assert c_in == C
    n_pad = _round_up(n_classes, 128)        # lane-dense output -> unmasked vst

    # Free reshape NHWC -> (B, HW, C): C=512 sits on the 128-lane axis.
    # Single bf16 cast halves the dominant activation DMA.
    x = feat.reshape(B, HW, C).astype(jnp.bfloat16)

    bt = _pick_batch_tile(B, HW, C)
    grid = (pl.cdiv(B, bt),)   # no batch pad; partial last tile is row-independent

    # Classifier params: fold 1/HW (avg-pool) into the f32 weight, then cast to
    # bf16, transposed to (C, n_pad).  Bias stays f32 (zero lane padding).
    w_t = jnp.zeros((C, n_pad), jnp.float32)
    w_t = w_t.at[:, :n_classes].set(w_fc.T.astype(jnp.float32) * (1.0 / HW))
    w_t = w_t.astype(jnp.bfloat16)
    b_p = jnp.zeros((1, n_pad), jnp.float32)
    b_p = b_p.at[0, :n_classes].set(b_fc.astype(jnp.float32))

    kernel = functools.partial(_head_kernel, negative_slope=negative_slope)
    out = pl.pallas_call(
        kernel,
        out_shape=jax.ShapeDtypeStruct((B, n_pad), jnp.float32),
        grid=grid,
        in_specs=[
            pl.BlockSpec((bt, HW, C), lambda i: (i, 0, 0)),  # batch-tiled acts
            pl.BlockSpec((C, n_pad), lambda i: (0, 0)),      # weight: resident
            pl.BlockSpec((1, n_pad), lambda i: (0, 0)),      # bias:   resident
        ],
        out_specs=pl.BlockSpec((bt, n_pad), lambda i: (i, 0)),
        compiler_params=pltpu.CompilerParams(
            dimension_semantics=("parallel",),   # independent batch tiles
            vmem_limit_bytes=32 * 1024 * 1024,   # explicit, v7x-safe
        ),
    )(x, w_t, b_p)
    return out[:, :n_classes]


def resnet18_head_ref(feat, w_fc, b_fc, negative_slope=NEG_SLOPE):
    """Pure-JAX reference of the module head (f32 throughout, NHWC feat)."""
    x = jnp.where(feat >= 0, feat, negative_slope * feat)
    pooled = jnp.mean(x, axis=(1, 2))
    return pooled @ w_fc.T + b_fc


# ----------------------------------------------------------------------------
# ResNet-18 trunk (`self.features` == children()[:-2]), inference-mode BN.
# NHWC layout, bf16 conv operands, f32 accumulation.
# TODO(synk): trunk uses XLA conv/reduce_window primitives, not Pallas convs.
# ----------------------------------------------------------------------------
def _conv2d(x, w, stride, padding):
    return lax.conv_general_dilated(
        x.astype(jnp.bfloat16), w.astype(jnp.bfloat16),
        window_strides=(stride, stride),
        padding=((padding, padding), (padding, padding)),
        dimension_numbers=("NHWC", "HWIO", "NHWC"),
        preferred_element_type=jnp.float32)


def _batchnorm(x, bn):
    scale = bn["gamma"] * lax.rsqrt(bn["var"] + BN_EPS)
    shift = bn["beta"] - bn["mean"] * scale
    return x * scale[None, None, None, :] + shift[None, None, None, :]


def _maxpool_3x3_s2(x):
    return lax.reduce_window(
        x, -jnp.inf, lax.max,
        window_dimensions=(1, 3, 3, 1),
        window_strides=(1, 2, 2, 1),
        padding=((0, 0), (1, 1), (1, 1), (0, 0)))


def _basic_block(x, blk, stride):
    identity = x
    out = _conv2d(x, blk["conv1"], stride, 1)
    out = _batchnorm(out, blk["bn1"])
    out = jnp.maximum(out, 0.0)
    out = _conv2d(out, blk["conv2"], 1, 1)
    out = _batchnorm(out, blk["bn2"])
    if "down_conv" in blk:
        identity = _batchnorm(_conv2d(x, blk["down_conv"], stride, 0),
                              blk["down_bn"])
    return jnp.maximum(out + identity, 0.0)


def resnet18_features(x_nhwc, params):
    x = _conv2d(x_nhwc, params["conv1"], 2, 3)
    x = _batchnorm(x, params["bn1"])
    x = jnp.maximum(x, 0.0)
    x = _maxpool_3x3_s2(x)
    for layer in params["layers"]:
        for bi, blk in enumerate(layer):
            stride = 2 if (bi == 0 and "down_conv" in blk) else 1
            x = _basic_block(x, blk, stride)
    return x                                   # (B, H/32, W/32, 512) f32


# ----------------------------------------------------------------------------
# Deterministic parameter init (pretrained weights unavailable in-script).
# ----------------------------------------------------------------------------
def _init_conv(key, cout, cin, k):
    fan_in = cin * k * k
    return math.sqrt(2.0 / fan_in) * jax.random.normal(
        key, (k, k, cin, cout), jnp.float32)    # HWIO


def _init_bn(key, c):
    kg, kb, km, kv = jax.random.split(key, 4)
    return {
        "gamma": 1.0 + 0.1 * jax.random.normal(kg, (c,), jnp.float32),
        "beta": 0.1 * jax.random.normal(kb, (c,), jnp.float32),
        "mean": 0.1 * jax.random.normal(km, (c,), jnp.float32),
        "var": 1.0 + 0.1 * jnp.abs(jax.random.normal(kv, (c,), jnp.float32)),
    }


def init_resnet18_params(key):
    keys = iter(jax.random.split(key, 64))
    params = {
        "conv1": _init_conv(next(keys), 64, 3, 7),
        "bn1": _init_bn(next(keys), 64),
        "layers": [],
    }
    in_c = 64
    for out_c in (64, 128, 256, 512):
        layer = []
        for bi in range(2):
            cin = in_c if bi == 0 else out_c
            blk = {
                "conv1": _init_conv(next(keys), out_c, cin, 3),
                "bn1": _init_bn(next(keys), out_c),
                "conv2": _init_conv(next(keys), out_c, out_c, 3),
                "bn2": _init_bn(next(keys), out_c),
            }
            if bi == 0 and out_c != in_c:          # layer2/3/4 block0 downsample
                blk["down_conv"] = _init_conv(next(keys), out_c, in_c, 1)
                blk["down_bn"] = _init_bn(next(keys), out_c)
            layer.append(blk)
        params["layers"].append(layer)
        in_c = out_c
    return params


# ----------------------------------------------------------------------------
# Full module forward + pure-JAX reference (both take NCHW input, like PyTorch)
# ----------------------------------------------------------------------------
def resnet18_forward(x_nchw, params, w_fc, b_fc):
    x = jnp.transpose(x_nchw, (0, 2, 3, 1))         # single NCHW->NHWC transpose
    feat = resnet18_features(x, params)              # self.features(x)
    return resnet18_head_pallas(feat, w_fc, b_fc)    # fused Pallas head


def resnet18_forward_ref(x_nchw, params, w_fc, b_fc):
    x = jnp.transpose(x_nchw, (0, 2, 3, 1))
    feat = resnet18_features(x, params)
    return resnet18_head_ref(feat, w_fc, b_fc)


if __name__ == "__main__":
    key = jax.random.PRNGKey(0)
    k_params, k_x, k_w = jax.random.split(key, 3)

    B, H, W = 2, 64, 64        # small RGB input; trunk output = (B, 2, 2, 512)
    n_classes = 45

    x = jax.random.normal(k_x, (B, 3, H, W), dtype=jnp.float32)
    params = init_resnet18_params(k_params)
    # self.classifier = nn.Linear(512, n_classes); nn.init.constant_(bias, 0)
    w_fc = 0.05 * jax.random.normal(k_w, (n_classes, 512), dtype=jnp.float32)
    b_fc = jnp.zeros((n_classes,), jnp.float32)

    out = jax.jit(resnet18_forward)(x, params, w_fc, b_fc)
    out = jax.block_until_ready(out)
    assert out.shape == (B, n_classes)

    ref = jax.jit(resnet18_forward_ref)(x, params, w_fc, b_fc)
    ref = jax.block_until_ready(ref)

    # bf16 activations + bf16 classifier weights in the kernel -> compare at a
    # bf16-appropriate tolerance relative to the output scale.
    err = float(jnp.max(jnp.abs(out - ref)))
    scale = float(jnp.max(jnp.abs(ref))) + 1e-6
    assert err <= 2e-2 * scale + 1e-3, f"max abs err {err} vs scale {scale}"

    print("KERNEL_OK")
</pallas_src>

<mosaic_0001>
module attributes {stable_mosaic.version = 11 : i64} {
  func.func @_head_kernel(%arg0: i32, %arg1: memref<2x4x512xbf16, #tpu.memory_space<vmem>>, %arg2: memref<512x128xbf16, #tpu.memory_space<vmem>>, %arg3: memref<1x128xf32, #tpu.memory_space<vmem>>, %arg4: memref<2x128xf32, #tpu.memory_space<vmem>>) attributes {dimension_semantics = [#tpu.dimension_semantics<parallel>], iteration_bounds = array<i64: 1>, scalar_prefetch = 0 : i64, scratch_operands = 0 : i64, tpu.core_type = #tpu.core_type<tc>, window_params = [{transform_indices = @transform_0, window_bounds = array<i64: 2, 4, 512>}, {pipeline_mode = #tpu.pipeline_mode<synchronous>, transform_indices = @transform_1, window_bounds = array<i64: 512, 128>}, {pipeline_mode = #tpu.pipeline_mode<synchronous>, transform_indices = @transform_2, window_bounds = array<i64: 1, 128>}, {transform_indices = @transform_3, window_bounds = array<i64: 2, 128>}]} {
    %c0 = arith.constant 0 : index
    %c0_0 = arith.constant 0 : index
    %c0_1 = arith.constant 0 : index
    %0 = vector.load %arg1[%c0, %c0_0, %c0_1] : memref<2x4x512xbf16, #tpu.memory_space<vmem>>, vector<2x4x512xbf16>
    %1 = arith.extf %0 : vector<2x4x512xbf16> to vector<2x4x512xf32>
    %cst = arith.constant 0.000000e+00 : f32
    %2 = vector.broadcast %cst : f32 to vector<2x4x512xf32>
    %3 = arith.cmpf oge, %1, %2 : vector<2x4x512xf32>
    %cst_2 = arith.constant 0.00999999977 : f32
    %4 = vector.broadcast %cst_2 : f32 to vector<2x4x512xf32>
    %5 = arith.mulf %4, %1 : vector<2x4x512xf32>
    %6 = arith.select %3, %1, %5 : vector<2x4x512xi1>, vector<2x4x512xf32>
    %cst_3 = arith.constant dense<0.000000e+00> : vector<2x512xf32>
    %7 = vector.multi_reduction <add>, %6, %cst_3 [1] : vector<2x4x512xf32> to vector<2x512xf32>
    %8 = arith.truncf %7 : vector<2x512xf32> to vector<2x512xbf16>
    %c0_4 = arith.constant 0 : index
    %c0_5 = arith.constant 0 : index
    %9 = vector.load %arg2[%c0_4, %c0_5] : memref<512x128xbf16, #tpu.memory_space<vmem>>, vector<512x128xbf16>
    %cst_6 = arith.constant dense<0.000000e+00> : vector<2x128xf32>
    %10 = tpu.matmul %8, %9, %cst_6 {dimension_numbers = #tpu.dot_dimension_numbers<[1], [0], [0], [1], [0, 0, 1, 1], [], []>} : vector<2x512xbf16>, vector<512x128xbf16>, vector<2x128xf32> -> vector<2x128xf32>
    %c0_7 = arith.constant 0 : index
    %c0_8 = arith.constant 0 : index
    %11 = vector.load %arg3[%c0_7, %c0_8] : memref<1x128xf32, #tpu.memory_space<vmem>>, vector<1x128xf32>
    %12 = vector.broadcast %11 : vector<1x128xf32> to vector<2x128xf32>
    %13 = arith.addf %10, %12 : vector<2x128xf32>
    %c0_9 = arith.constant 0 : index
    %c0_10 = arith.constant 0 : index
    %14 = vector.load %arg4[%c0_9, %c0_10] : memref<2x128xf32, #tpu.memory_space<vmem>>, vector<2x128xf32>
    tpu.vector_store %arg4[%c0_9, %c0_10], %13 {strides = array<i32>} : memref<2x128xf32, #tpu.memory_space<vmem>>, vector<2x128xf32>,
    return
  }
  func.func @transform_0(%arg0: i32) -> (i32, i32, i32) {
    %c0_i32 = arith.constant 0 : i32
    %c0_i32_0 = arith.constant 0 : i32
    %c0_i32_1 = arith.constant 0 : i32
    return %arg0, %c0_i32, %c0_i32_0 : i32, i32, i32
  }
  func.func @transform_1(%arg0: i32) -> (i32, i32) {
    %c0_i32 = arith.constant 0 : i32
    %c0_i32_0 = arith.constant 0 : i32
    %c0_i32_1 = arith.constant 0 : i32
    return %c0_i32, %c0_i32_0 : i32, i32
  }
  func.func @transform_2(%arg0: i32) -> (i32, i32) {
    %c0_i32 = arith.constant 0 : i32
    %c0_i32_0 = arith.constant 0 : i32
    %c0_i32_1 = arith.constant 0 : i32
    return %c0_i32, %c0_i32_0 : i32, i32
  }
  func.func @transform_3(%arg0: i32) -> (i32, i32) {
    %c0_i32 = arith.constant 0 : i32
    %c0_i32_0 = arith.constant 0 : i32
    return %arg0, %c0_i32 : i32, i32
  }
}

</mosaic_0001>

<llo_original>
// kernel: reverse
$region0: #{reverse}
  #allocation0 [shape = 's32[1]{0}', space=sflag, size = 0x4, scoped, tag = 'scoped memory for reverse']
  %s0 = inlined_call_operand.vmem [shape: bf16[3,3,512,512], index: 0, kind: input, shape index: {}]
  %s1 = inlined_call_operand.vmem [shape: bf16[3,3,512,512], index: 1, kind: output, shape index: {}]
  loop: start=0, step=1, limit=28
  $region2: #{reverse} parent=0 // loop_pre_header
    _
  $region3: #{reverse} parent=0 // loop_header
    %s3 = sphi 0, %s7
    %p4 = scmp.ge.s32.totalorder %s3, 28
    %s18 = sphi 0, %s76
    %s19 = sphi 0, %s72
    %s20 = sphi 0, %s68
    %s21 = sphi 0, %s64
    %s22 = sphi 0, %s18
    %s23 = sphi 0, %s19
    %s24 = sphi 0, %s20
    %s25 = sphi 0, %s21
    %s26 = sphi 0, %s22
    %s27 = sphi 0, %s23
    %s28 = sphi 0, %s24
    %s29 = sphi 0, %s25
    %s30 = sphi 0, %s26
    %s31 = sphi 0, %s27
    %s32 = sphi 0, %s28
    %s33 = sphi 0, %s29
    %s34 = sphi 0, %s30
    %s35 = sphi 0, %s31
    %s36 = sphi 0, %s32
    %s37 = sphi 0, %s33
    %s38 = sphi 0, %s34
    %s39 = sphi 0, %s35
    %s40 = sphi 0, %s36
    %s41 = sphi 0, %s37
    %s42 = sphi 0, %s38
    %s43 = sphi 0, %s39
    %s44 = sphi 0, %s40
    %s45 = sphi 0, %s41
    %s46 = sphi 0, %s42
    %s47 = sphi 0, %s43
    %s48 = sphi 0, %s44
    %s49 = sphi 0, %s45
    %s50 = sphi 0, %s46
    %s51 = sphi 0, %s47
    %s52 = sphi 0, %s48
    %s53 = sphi 0, %s49
    %s54 = sphi 0, %s50
    %s55 = sphi 0, %s51
    %s56 = sphi 0, %s52
    %s57 = sphi 0, %s53
    %s58 = sphi 0, %s54
    %s59 = sphi 0, %s55
    %s60 = sphi 0, %s56
    %s61 = sphi 0, %s57
  $region4: #{reverse} parent=0 // loop_header_branch
    %6 = sbr.rel (%p4) target = $region8
  $region5: #{reverse} parent=0 // loop_body
    %s8 = ssub.s32 %s3, 1
    %s9 = ssub.s32 %s3, 2
    %s10 = ssub.s32 %s3, 3
    %s11 = ssub.s32 %s3, 4
    %s12 = ssub.s32 %s3, 5
    %s13 = ssub.s32 %s3, 6
    %s14 = ssub.s32 %s3, 7
    %s15 = ssub.s32 %s3, 8
    %s16 = ssub.s32 %s3, 9
    %s17 = ssub.s32 %s3, 10
    %s62 = sadd.s32 1, %s21
    %p63 = scmp.ge.s32.totalorder %s62, 1
    %s64 = scalar_select %p63, 0, %s62
    %s65 = sadd.s32 1, %s20
    %s66 = scalar_select %p63, %s65, %s20
    %p67 = scmp.ge.s32.totalorder %s66, 2
    %s68 = scalar_select %p67, 0, %s66
    %s69 = sadd.s32 1, %s19
    %s70 = scalar_select %p67, %s69, %s19
    %p71 = scmp.ge.s32.totalorder %s70, 3
    %s72 = scalar_select %p71, 0, %s70
    %s73 = sadd.s32 1, %s18
    %s74 = scalar_select %p71, %s73, %s18
    %p75 = scmp.ge.s32.totalorder %s74, 3
    %s76 = scalar_select %p75, 0, %s74
    %p77 = scmp.le.s32.totalorder 5, %s3
    %p78 = scmp.lt.s32.totalorder %s3, 23
    %p79 = pnand %p77, %p78
    %p80 = pneg %p79
    // Predicated region
    $region9: #{reverse} parent=5 // pred_check
      _
    $region10: #{reverse} parent=5 // pred_check_branch
      %82 = sbr.rel (%p79) target = $region12
    $region11: #{reverse} parent=5 // pred_region
      %s83 = ssub.s32 %s3, 5
    $region12: #{reverse} parent=5 // pred_fallthru
      _
    %p84 = scmp.lt.s32.totalorder %s3, 18
    // Predicated region
    $region13: #{reverse} parent=5 // pred_check
      %p85 = pneg %p84
    $region14: #{reverse} parent=5 // pred_check_branch
      %87 = sbr.rel (%p85) target = $region16
    $region15: #{reverse} parent=5 // pred_region
      %s88 = ssub.s32 2, %s18
      %s89 = ssub.s32 2, %s19
      %s90 = smul.u32 32, %s20
      %s91 = smul.u32 4, %s21
      %p92 = scmp.lt.s32.totalorder %s88, 2
      %s93 = scalar_select %p92, %s88, 2
      %p94 = scmp.lt.s32.totalorder %s89, 2
      %s95 = scalar_select %p94, %s89, 2
      %p96 = scmp.lt.s32.totalorder %s90, 63
      %s97 = scalar_select %p96, %s90, 63
      %p98 = scmp.lt.s32.totalorder %s91, 3
      %s99 = scalar_select %p98, %s91, 3
      %s100 = smul.addr %s97, 4
      %s101 = sadd.s32 %s99, %s100
      %s102 = smul.addr %s95, 256
      %s103 = sadd.s32 %s101, %s102
      %s104 = smul.addr %s93, 768
      %s105 = sadd.s32 %s103, %s104
      %s106 = smul.addr %s105, 4
      %s107 = scalar_lea.vmem %s0, %s106
      %s108 = ssub.s32 2, %s18
      %s109 = ssub.s32 2, %s19
      %s110 = smul.u32 32, %s20
      %s111 = smul.u32 4, %s21
    $region16: #{reverse} parent=5 // pred_fallthru
      _
    %p112 = scmp.le.s32.totalorder 5, %s3
    %p113 = scmp.lt.s32.totalorder %s3, 23
    %p114 = pnand %p112, %p113
    %p115 = pneg %p114
    // Predicated region
    $region17: #{reverse} parent=5 // pred_check
      _
    $region18: #{reverse} parent=5 // pred_check_branch
      %117 = sbr.rel (%p114) target = $region20
    $region19: #{reverse} parent=5 // pred_region
      %s118 = ssub.s32 %s3, 5
      %s119 = ssub.s32 2, %s38
      %s120 = ssub.s32 2, %s39
      %s121 = smul.u32 32, %s40
      %s122 = smul.u32 4, %s41
      %p123 = scmp.lt.s32.totalorder %s119, 2
      %s124 = scalar_select %p123, %s119, 2
      %p125 = scmp.lt.s32.totalorder %s120, 2
      %s126 = scalar_select %p125, %s120, 2
      %p127 = scmp.lt.s32.totalorder %s121, 63
      %s128 = scalar_select %p127, %s121, 63
      %p129 = scmp.lt.s32.totalorder %s122, 3
      %s130 = scalar_select %p129, %s122, 3
      %s131 = smul.addr %s128, 4
      %s132 = sadd.s32 %s130, %s131
      %s133 = smul.addr %s126, 256
      %s134 = sadd.s32 %s132, %s133
      %s135 = smul.addr %s124, 768
      %s136 = sadd.s32 %s134, %s135
      %s137 = smul.addr %s136, 4
      %s138 = scalar_lea.vmem %s0, %s137
      %s139 = smul.u32 32, %s40
      %s140 = smul.u32 4, %s41
      %p141 = scmp.lt.s32.totalorder %s38, 2
      %s142 = scalar_select %p141, %s38, 2
      %p143 = scmp.lt.s32.totalorder %s39, 2
      %s144 = scalar_select %p143, %s39, 2
      %p145 = scmp.lt.s32.totalorder %s139, 63
      %s146 = scalar_select %p145, %s139, 63
      %p147 = scmp.lt.s32.totalorder %s140, 3
      %s148 = scalar_select %p147, %s140, 3
      %s149 = smul.addr %s146, 4
      %s150 = sadd.s32 %s148, %s149
      %s151 = smul.addr %s144, 256
      %s152 = sadd.s32 %s150, %s151
      %s153 = smul.addr %s142, 768
      %s154 = sadd.s32 %s152, %s153
      %s155 = smul.addr %s154, 4
      %s156 = scalar_lea.vmem %s1, %s155
      %s157 = smul.u32 32, %s40
      %s158 = smul.u32 4, %s41
      %s159 = ssub.s32 2, %s38
      %s160 = ssub.s32 2, %s39
      %s161 = smul.u32 32, %s40
      %s162 = smul.u32 4, %s41
      %p163 = scmp.lt.s32.totalorder %s159, 2
      %s164 = scalar_select %p163, %s159, 2
      %p165 = scmp.lt.s32.totalorder %s160, 2
      %s166 = scalar_select %p165, %s160, 2
      %p167 = scmp.lt.s32.totalorder %s161, 63
      %s168 = scalar_select %p167, %s161, 63
      %p169 = scmp.lt.s32.totalorder %s162, 3
      %s170 = scalar_select %p169, %s162, 3
      %s171 = smul.addr %s168, 4
      %s172 = sadd.s32 %s170, %s171
      %s173 = smul.addr %s166, 256
      %s174 = sadd.s32 %s172, %s173
      %s175 = smul.addr %s164, 768
      %s176 = sadd.s32 %s174, %s175
      %s177 = smul.addr %s176, 4
      %s178 = scalar_lea.vmem %s0, %s177
      %s179 = ssub.s32 2, %s38
      %s180 = ssub.s32 2, %s39
      %s181 = smul.u32 32, %s40
      %s182 = smul.u32 4, %s41
      %s183 = smul.u32 32, %s40
      %s184 = smul.u32 4, %s41
      %p185 = scmp.lt.s32.totalorder %s38, 2
      %s186 = scalar_select %p185, %s38, 2
      %p187 = scmp.lt.s32.totalorder %s39, 2
      %s188 = scalar_select %p187, %s39, 2
      %p189 = scmp.lt.s32.totalorder %s183, 63
      %s190 = scalar_select %p189, %s183, 63
      %p191 = scmp.lt.s32.totalorder %s184, 3
      %s192 = scalar_select %p191, %s184, 3
      %s193 = smul.addr %s190, 4
      %s194 = sadd.s32 %s192, %s193
      %s195 = smul.addr %s188, 256
      %s196 = sadd.s32 %s194, %s195
      %s197 = smul.addr %s186, 768
      %s198 = sadd.s32 %s196, %s197
      %s199 = smul.addr %s198, 4
      %s200 = scalar_lea.vmem %s1, %s199
      %s201 = smul.u32 32, %s40
      %s202 = smul.u32 4, %s41
      %v203 = vld [vmem:[%s178] sm:$0xf]
      %v204 = vunpack.c.l.bf16 %v203
      %v205 = vunpack.c.h.bf16 %v203
      %s206 = scalar_lea.vmem %s178, 16
      %v207 = vld [vmem:[%s206] sm:$0xf]
      %v208 = vunpack.c.l.bf16 %v207
      %v209 = vunpack.c.h.bf16 %v207
      %s210 = scalar_lea.vmem %s200, 16
      %s211 = scalar_lea.vmem %s178, 32
      %v212 = vld [vmem:[%s211] sm:$0xf]
      %v213 = vunpack.c.l.bf16 %v212
      %v214 = vunpack.c.h.bf16 %v212
      %s215 = scalar_lea.vmem %s200, 32
      %s216 = scalar_lea.vmem %s178, 48
      %v217 = vld [vmem:[%s216] sm:$0xf]
      %v218 = vunpack.c.l.bf16 %v217
      %v219 = vunpack.c.h.bf16 %v217
      %s220 = scalar_lea.vmem %s200, 48
      %s221 = scalar_lea.vmem %s178, 64
      %v222 = vld [vmem:[%s221] sm:$0xf]
      %v223 = vunpack.c.l.bf16 %v222
      %v224 = vunpack.c.h.bf16 %v222
      %s225 = scalar_lea.vmem %s200, 64
      %s226 = scalar_lea.vmem %s178, 80
      %v227 = vld [vmem:[%s226] sm:$0xf]
      %v228 = vunpack.c.l.bf16 %v227
      %v229 = vunpack.c.h.bf16 %v227
      %s230 = scalar_lea.vmem %s200, 80
      %s231 = scalar_lea.vmem %s178, 96
      %v232 = vld [vmem:[%s231] sm:$0xf]
      %v233 = vunpack.c.l.bf16 %v232
      %v234 = vunpack.c.h.bf16 %v232
      %s235 = scalar_lea.vmem %s200, 96
      %s236 = scalar_lea.vmem %s178, 112
      %v237 = vld [vmem:[%s236] sm:$0xf]
      %v238 = vunpack.c.l.bf16 %v237
      %v239 = vunpack.c.h.bf16 %v237
      %s240 = scalar_lea.vmem %s200, 112
      %s241 = scalar_lea.vmem %s178, 128
      %v242 = vld [vmem:[%s241] sm:$0xf]
      %v243 = vunpack.c.l.bf16 %v242
      %v244 = vunpack.c.h.bf16 %v242
      %s245 = scalar_lea.vmem %s200, 128
      %s246 = scalar_lea.vmem %s178, 144
      %v247 = vld [vmem:[%s246] sm:$0xf]
      %v248 = vunpack.c.l.bf16 %v247
      %v249 = vunpack.c.h.bf16 %v247
      %s250 = scalar_lea.vmem %s200, 144
      %s251 = scalar_lea.vmem %s178, 160
      %v252 = vld [vmem:[%s251] sm:$0xf]
      %v253 = vunpack.c.l.bf16 %v252
      %v254 = vunpack.c.h.bf16 %v252
      %s255 = scalar_lea.vmem %s200, 160
      %s256 = scalar_lea.vmem %s178, 176
      %v257 = vld [vmem:[%s256] sm:$0xf]
      %v258 = vunpack.c.l.bf16 %v257
      %v259 = vunpack.c.h.bf16 %v257
      %s260 = scalar_lea.vmem %s200, 176
      %s261 = scalar_lea.vmem %s178, 192
      %v262 = vld [vmem:[%s261] sm:$0xf]
      %v263 = vunpack.c.l.bf16 %v262
      %v264 = vunpack.c.h.bf16 %v262
      %s265 = scalar_lea.vmem %s200, 192
      %s266 = scalar_lea.vmem %s178, 208
      %v267 = vld [vmem:[%s266] sm:$0xf]
      %v268 = vunpack.c.l.bf16 %v267
      %v269 = vunpack.c.h.bf16 %v267
      %s270 = scalar_lea.vmem %s200, 208
      %s271 = scalar_lea.vmem %s178, 224
      %v272 = vld [vmem:[%s271] sm:$0xf]
      %v273 = vunpack.c.l.bf16 %v272
      %v274 = vunpack.c.h.bf16 %v272
      %s275 = scalar_lea.vmem %s200, 224
      %s276 = scalar_lea.vmem %s178, 240
      %v277 = vld [vmem:[%s276] sm:$0xf]
      %v278 = vunpack.c.l.bf16 %v277
      %v279 = vunpack.c.h.bf16 %v277
      %s280 = scalar_lea.vmem %s200, 240
      %s281 = scalar_lea.vmem %s178, 256
      %v282 = vld [vmem:[%s281] sm:$0xf]
      %v283 = vunpack.c.l.bf16 %v282
      %v284 = vunpack.c.h.bf16 %v282
      %s285 = scalar_lea.vmem %s200, 256
      %s286 = scalar_lea.vmem %s178, 272
      %v287 = vld [vmem:[%s286] sm:$0xf]
      %v288 = vunpack.c.l.bf16 %v287
      %v289 = vunpack.c.h.bf16 %v287
      %s290 = scalar_lea.vmem %s200, 272
      %s291 = scalar_lea.vmem %s178, 288
      %v292 = vld [vmem:[%s291] sm:$0xf]
      %v293 = vunpack.c.l.bf16 %v292
      %v294 = vunpack.c.h.bf16 %v292
      %s295 = scalar_lea.vmem %s200, 288
      %s296 = scalar_lea.vmem %s178, 304
      %v297 = vld [vmem:[%s296] sm:$0xf]
      %v298 = vunpack.c.l.bf16 %v297
      %v299 = vunpack.c.h.bf16 %v297
      %s300 = scalar_lea.vmem %s200, 304
      %s301 = scalar_lea.vmem %s178, 320
      %v302 = vld [vmem:[%s301] sm:$0xf]
      %v303 = vunpack.c.l.bf16 %v302
      %v304 = vunpack.c.h.bf16 %v302
      %s305 = scalar_lea.vmem %s200, 320
      %s306 = scalar_lea.vmem %s178, 336
      %v307 = vld [vmem:[%s306] sm:$0xf]
      %v308 = vunpack.c.l.bf16 %v307
      %v309 = vunpack.c.h.bf16 %v307
      %s310 = scalar_lea.vmem %s200, 336
      %s311 = scalar_lea.vmem %s178, 352
      %v312 = vld [vmem:[%s311] sm:$0xf]
      %v313 = vunpack.c.l.bf16 %v312
      %v314 = vunpack.c.h.bf16 %v312
      %s315 = scalar_lea.vmem %s200, 352
      %s316 = scalar_lea.vmem %s178, 368
      %v317 = vld [vmem:[%s316] sm:$0xf]
      %v318 = vunpack.c.l.bf16 %v317
      %v319 = vunpack.c.h.bf16 %v317
      %s320 = scalar_lea.vmem %s200, 368
      %s321 = scalar_lea.vmem %s178, 384
      %v322 = vld [vmem:[%s321] sm:$0xf]
      %v323 = vunpack.c.l.bf16 %v322
      %v324 = vunpack.c.h.bf16 %v322
      %s325 = scalar_lea.vmem %s200, 384
      %s326 = scalar_lea.vmem %s178, 400
      %v327 = vld [vmem:[%s326] sm:$0xf]
      %v328 = vunpack.c.l.bf16 %v327
      %v329 = vunpack.c.h.bf16 %v327
      %s330 = scalar_lea.vmem %s200, 400
      %s331 = scalar_lea.vmem %s178, 416
      %v332 = vld [vmem:[%s331] sm:$0xf]
      %v333 = vunpack.c.l.bf16 %v332
      %v334 = vunpack.c.h.bf16 %v332
      %s335 = scalar_lea.vmem %s200, 416
      %s336 = scalar_lea.vmem %s178, 432
      %v337 = vld [vmem:[%s336] sm:$0xf]
      %v338 = vunpack.c.l.bf16 %v337
      %v339 = vunpack.c.h.bf16 %v337
      %s340 = scalar_lea.vmem %s200, 432
      %s341 = scalar_lea.vmem %s178, 448
      %v342 = vld [vmem:[%s341] sm:$0xf]
      %v343 = vunpack.c.l.bf16 %v342
      %v344 = vunpack.c.h.bf16 %v342
      %s345 = scalar_lea.vmem %s200, 448
      %s346 = scalar_lea.vmem %s178, 464
      %v347 = vld [vmem:[%s346] sm:$0xf]
      %v348 = vunpack.c.l.bf16 %v347
      %v349 = vunpack.c.h.bf16 %v347
      %s350 = scalar_lea.vmem %s200, 464
      %s351 = scalar_lea.vmem %s178, 480
      %v352 = vld [vmem:[%s351] sm:$0xf]
      %v353 = vunpack.c.l.bf16 %v352
      %v354 = vunpack.c.h.bf16 %v352
      %s355 = scalar_lea.vmem %s200, 480
      %s356 = scalar_lea.vmem %s178, 496
      %v357 = vld [vmem:[%s356] sm:$0xf]
      %v358 = vunpack.c.l.bf16 %v357
      %v359 = vunpack.c.h.bf16 %v357
      %s360 = scalar_lea.vmem %s200, 496
      %s361 = scalar_lea.vmem %s178, 4
      %v362 = vld [vmem:[%s361] sm:$0xf]
      %v363 = vunpack.c.l.bf16 %v362
      %v364 = vunpack.c.h.bf16 %v362
      %s365 = scalar_lea.vmem %s200, 4
      %s366 = scalar_lea.vmem %s365, 4294967292
      %v367 = vpack.c.bf16 %v363, %v204
      %368 = vst [vmem:[%s366] sm:$0xff] %v367
      %s369 = scalar_lea.vmem %s178, 20
      %v370 = vld [vmem:[%s369] sm:$0xf]
      %v371 = vunpack.c.l.bf16 %v370
      %v372 = vunpack.c.h.bf16 %v370
      %s373 = scalar_lea.vmem %s200, 20
      %s374 = scalar_lea.vmem %s373, 4294967292
      %v375 = vpack.c.bf16 %v371, %v208
      %376 = vst [vmem:[%s374] sm:$0xff] %v375
      %s377 = scalar_lea.vmem %s178, 36
      %v378 = vld [vmem:[%s377] sm:$0xf]
      %v379 = vunpack.c.l.bf16 %v378
      %v380 = vunpack.c.h.bf16 %v378
      %s381 = scalar_lea.vmem %s200, 36
      %s382 = scalar_lea.vmem %s381, 4294967292
      %v383 = vpack.c.bf16 %v379, %v213
      %384 = vst [vmem:[%s382] sm:$0xff] %v383
      %s385 = scalar_lea.vmem %s178, 52
      %v386 = vld [vmem:[%s385] sm:$0xf]
      %v387 = vunpack.c.l.bf16 %v386
      %v388 = vunpack.c.h.bf16 %v386
      %s389 = scalar_lea.vmem %s200, 52
      %s390 = scalar_lea.vmem %s389, 4294967292
      %v391 = vpack.c.bf16 %v387, %v218
      %392 = vst [vmem:[%s390] sm:$0xff] %v391
      %s393 = scalar_lea.vmem %s178, 68
      %v394 = vld [vmem:[%s393] sm:$0xf]
      %v395 = vunpack.c.l.bf16 %v394
      %v396 = vunpack.c.h.bf16 %v394
      %s397 = scalar_lea.vmem %s200, 68
      %s398 = scalar_lea.vmem %s397, 4294967292
      %v399 = vpack.c.bf16 %v395, %v223
      %400 = vst [vmem:[%s398] sm:$0xff] %v399
      %s401 = scalar_lea.vmem %s178, 84
      %v402 = vld [vmem:[%s401] sm:$0xf]
      %v403 = vunpack.c.l.bf16 %v402
      %v404 = vunpack.c.h.bf16 %v402
      %s405 = scalar_lea.vmem %s200, 84
      %s406 = scalar_lea.vmem %s405, 4294967292
      %v407 = vpack.c.bf16 %v403, %v228
      %408 = vst [vmem:[%s406] sm:$0xff] %v407
      %s409 = scalar_lea.vmem %s178, 100
      %v410 = vld [vmem:[%s409] sm:$0xf]
      %v411 = vunpack.c.l.bf16 %v410
      %v412 = vunpack.c.h.bf16 %v410
      %s413 = scalar_lea.vmem %s200, 100
      %s414 = scalar_lea.vmem %s413, 4294967292
      %v415 = vpack.c.bf16 %v411, %v233
      %416 = vst [vmem:[%s414] sm:$0xff] %v415
      %s417 = scalar_lea.vmem %s178, 116
      %v418 = vld [vmem:[%s417] sm:$0xf]
      %v419 = vunpack.c.l.bf16 %v418
      %v420 = vunpack.c.h.bf16 %v418
      %s421 = scalar_lea.vmem %s200, 116
      %s422 = scalar_lea.vmem %s421, 4294967292
      %v423 = vpack.c.bf16 %v419, %v238
      %424 = vst [vmem:[%s422] sm:$0xff] %v423
      %s425 = scalar_lea.vmem %s178, 132
      %v426 = vld [vmem:[%s425] sm:$0xf]
      %v427 = vunpack.c.l.bf16 %v426
      %v428 = vunpack.c.h.bf16 %v426
      %s429 = scalar_lea.vmem %s200, 132
      %s430 = scalar_lea.vmem %s429, 4294967292
      %v431 = vpack.c.bf16 %v427, %v243
      %432 = vst [vmem:[%s430] sm:$0xff] %v431
      %s433 = scalar_lea.vmem %s178, 148
      %v434 = vld [vmem:[%s433] sm:$0xf]
      %v435 = vunpack.c.l.bf16 %v434
      %v436 = vunpack.c.h.bf16 %v434
      %s437 = scalar_lea.vmem %s200, 148
      %s438 = scalar_lea.vmem %s437, 4294967292
      %v439 = vpack.c.bf16 %v435, %v248
      %440 = vst [vmem:[%s438] sm:$0xff] %v439
      %s441 = scalar_lea.vmem %s178, 164
      %v442 = vld [vmem:[%s441] sm:$0xf]
      %v443 = vunpack.c.l.bf16 %v442
      %v444 = vunpack.c.h.bf16 %v442
      %s445 = scalar_lea.vmem %s200, 164
      %s446 = scalar_lea.vmem %s445, 4294967292
      %v447 = vpack.c.bf16 %v443, %v253
      %448 = vst [vmem:[%s446] sm:$0xff] %v447
      %s449 = scalar_lea.vmem %s178, 180
      %v450 = vld [vmem:[%s449] sm:$0xf]
      %v451 = vunpack.c.l.bf16 %v450
      %v452 = vunpack.c.h.bf16 %v450
      %s453 = scalar_lea.vmem %s200, 180
      %s454 = scalar_lea.vmem %s453, 4294967292
      %v455 = vpack.c.bf16 %v451, %v258
      %456 = vst [vmem:[%s454] sm:$0xff] %v455
      %s457 = scalar_lea.vmem %s178, 196
      %v458 = vld [vmem:[%s457] sm:$0xf]
      %v459 = vunpack.c.l.bf16 %v458
      %v460 = vunpack.c.h.bf16 %v458
      %s461 = scalar_lea.vmem %s200, 196
      %s462 = scalar_lea.vmem %s461, 4294967292
      %v463 = vpack.c.bf16 %v459, %v263
      %464 = vst [vmem:[%s462] sm:$0xff] %v463
      %s465 = scalar_lea.vmem %s178, 212
      %v466 = vld [vmem:[%s465] sm:$0xf]
      %v467 = vunpack.c.l.bf16 %v466
      %v468 = vunpack.c.h.bf16 %v466
      %s469 = scalar_lea.vmem %s200, 212
      %s470 = scalar_lea.vmem %s469, 4294967292
      %v471 = vpack.c.bf16 %v467, %v268
      %472 = vst [vmem:[%s470] sm:$0xff] %v471
      %s473 = scalar_lea.vmem %s178, 228
      %v474 = vld [vmem:[%s473] sm:$0xf]
      %v475 = vunpack.c.l.bf16 %v474
      %v476 = vunpack.c.h.bf16 %v474
      %s477 = scalar_lea.vmem %s200, 228
      %s478 = scalar_lea.vmem %s477, 4294967292
      %v479 = vpack.c.bf16 %v475, %v273
      %480 = vst [vmem:[%s478] sm:$0xff] %v479
      %s481 = scalar_lea.vmem %s178, 244
      %v482 = vld [vmem:[%s481] sm:$0xf]
      %v483 = vunpack.c.l.bf16 %v482
      %v484 = vunpack.c.h.bf16 %v482
      %s485 = scalar_lea.vmem %s200, 244
      %s486 = scalar_lea.vmem %s485, 4294967292
      %v487 = vpack.c.bf16 %v483, %v278
      %488 = vst [vmem:[%s486] sm:$0xff] %v487
      %s489 = scalar_lea.vmem %s178, 260
      %v490 = vld [vmem:[%s489] sm:$0xf]
      %v491 = vunpack.c.l.bf16 %v490
      %v492 = vunpack.c.h.bf16 %v490
      %s493 = scalar_lea.vmem %s200, 260
      %s494 = scalar_lea.vmem %s493, 4294967292
      %v495 = vpack.c.bf16 %v491, %v283
      %496 = vst [vmem:[%s494] sm:$0xff] %v495
      %s497 = scalar_lea.vmem %s178, 276
      %v498 = vld [vmem:[%s497] sm:$0xf]
      %v499 = vunpack.c.l.bf16 %v498
      %v500 = vunpack.c.h.bf16 %v498
      %s501 = scalar_lea.vmem %s200, 276
      %s502 = scalar_lea.vmem %s501, 4294967292
      %v503 = vpack.c.bf16 %v499, %v288
      %504 = vst [vmem:[%s502] sm:$0xff] %v503
      %s505 = scalar_lea.vmem %s178, 292
      %v506 = vld [vmem:[%s505] sm:$0xf]
      %v507 = vunpack.c.l.bf16 %v506
      %v508 = vunpack.c.h.bf16 %v506
      %s509 = scalar_lea.vmem %s200, 292
      %s510 = scalar_lea.vmem %s509, 4294967292
      %v511 = vpack.c.bf16 %v507, %v293
      %512 = vst [vmem:[%s510] sm:$0xff] %v511
      %s513 = scalar_lea.vmem %s178, 308
      %v514 = vld [vmem:[%s513] sm:$0xf]
      %v515 = vunpack.c.l.bf16 %v514
      %v516 = vunpack.c.h.bf16 %v514
      %s517 = scalar_lea.vmem %s200, 308
      %s518 = scalar_lea.vmem %s517, 4294967292
      %v519 = vpack.c.bf16 %v515, %v298
      %520 = vst [vmem:[%s518] sm:$0xff] %v519
      %s521 = scalar_lea.vmem %s178, 324
      %v522 = vld [vmem:[%s521] sm:$0xf]
      %v523 = vunpack.c.l.bf16 %v522
      %v524 = vunpack.c.h.bf16 %v522
      %s525 = scalar_lea.vmem %s200, 324
      %s526 = scalar_lea.vmem %s525, 4294967292
      %v527 = vpack.c.bf16 %v523, %v303
      %528 = vst [vmem:[%s526] sm:$0xff] %v527
      %s529 = scalar_lea.vmem %s178, 340
      %v530 = vld [vmem:[%s529] sm:$0xf]
      %v531 = vunpack.c.l.bf16 %v530
      %v532 = vunpack.c.h.bf16 %v530
      %s533 = scalar_lea.vmem %s200, 340
      %s534 = scalar_lea.vmem %s533, 4294967292
      %v535 = vpack.c.bf16 %v531, %v308
      %536 = vst [vmem:[%s534] sm:$0xff] %v535
      %s537 = scalar_lea.vmem %s178, 356
      %v538 = vld [vmem:[%s537] sm:$0xf]
      %v539 = vunpack.c.l.bf16 %v538
      %v540 = vunpack.c.h.bf16 %v538
      %s541 = scalar_lea.vmem %s200, 356
      %s542 = scalar_lea.vmem %s541, 4294967292
      %v543 = vpack.c.bf16 %v539, %v313
      %544 = vst [vmem:[%s542] sm:$0xff] %v543
      %s545 = scalar_lea.vmem %s178, 372
      %v546 = vld [vmem:[%s545] sm:$0xf]
      %v547 = vunpack.c.l.bf16 %v546
      %v548 = vunpack.c.h.bf16 %v546
      %s549 = scalar_lea.vmem %s200, 372
      %s550 = scalar_lea.vmem %s549, 4294967292
      %v551 = vpack.c.bf16 %v547, %v318
      %552 = vst [vmem:[%s550] sm:$0xff] %v551
      %s553 = scalar_lea.vmem %s178, 388
      %v554 = vld [vmem:[%s553] sm:$0xf]
      %v555 = vunpack.c.l.bf16 %v554
      %v556 = vunpack.c.h.bf16 %v554
      %s557 = scalar_lea.vmem %s200, 388
      %s558 = scalar_lea.vmem %s557, 4294967292
      %v559 = vpack.c.bf16 %v555, %v323
      %560 = vst [vmem:[%s558] sm:$0xff] %v559
      %s561 = scalar_lea.vmem %s178, 404
      %v562 = vld [vmem:[%s561] sm:$0xf]
      %v563 = vunpack.c.l.bf16 %v562
      %v564 = vunpack.c.h.bf16 %v562
      %s565 = scalar_lea.vmem %s200, 404
      %s566 = scalar_lea.vmem %s565, 4294967292
      %v567 = vpack.c.bf16 %v563, %v328
      %568 = vst [vmem:[%s566] sm:$0xff] %v567
      %s569 = scalar_lea.vmem %s178, 420
      %v570 = vld [vmem:[%s569] sm:$0xf]
      %v571 = vunpack.c.l.bf16 %v570
      %v572 = vunpack.c.h.bf16 %v570
      %s573 = scalar_lea.vmem %s200, 420
      %s574 = scalar_lea.vmem %s573, 4294967292
      %v575 = vpack.c.bf16 %v571, %v333
      %576 = vst [vmem:[%s574] sm:$0xff] %v575
      %s577 = scalar_lea.vmem %s178, 436
      %v578 = vld [vmem:[%s577] sm:$0xf]
      %v579 = vunpack.c.l.bf16 %v578
      %v580 = vunpack.c.h.bf16 %v578
      %s581 = scalar_lea.vmem %s200, 436
      %s582 = scalar_lea.vmem %s581, 4294967292
      %v583 = vpack.c.bf16 %v579, %v338
      %584 = vst [vmem:[%s582] sm:$0xff] %v583
      %s585 = scalar_lea.vmem %s178, 452
      %v586 = vld [vmem:[%s585] sm:$0xf]
      %v587 = vunpack.c.l.bf16 %v586
      %v588 = vunpack.c.h.bf16 %v586
      %s589 = scalar_lea.vmem %s200, 452
      %s590 = scalar_lea.vmem %s589, 4294967292
      %v591 = vpack.c.bf16 %v587, %v343
      %592 = vst [vmem:[%s590] sm:$0xff] %v591
      %s593 = scalar_lea.vmem %s178, 468
      %v594 = vld [vmem:[%s593] sm:$0xf]
      %v595 = vunpack.c.l.bf16 %v594
      %v596 = vunpack.c.h.bf16 %v594
      %s597 = scalar_lea.vmem %s200, 468
      %s598 = scalar_lea.vmem %s597, 4294967292
      %v599 = vpack.c.bf16 %v595, %v348
      %600 = vst [vmem:[%s598] sm:$0xff] %v599
      %s601 = scalar_lea.vmem %s178, 484
      %v602 = vld [vmem:[%s601] sm:$0xf]
      %v603 = vunpack.c.l.bf16 %v602
      %v604 = vunpack.c.h.bf16 %v602
      %s605 = scalar_lea.vmem %s200, 484
      %s606 = scalar_lea.vmem %s605, 4294967292
      %v607 = vpack.c.bf16 %v603, %v353
      %608 = vst [vmem:[%s606] sm:$0xff] %v607
      %s609 = scalar_lea.vmem %s178, 500
      %v610 = vld [vmem:[%s609] sm:$0xf]
      %v611 = vunpack.c.l.bf16 %v610
      %v612 = vunpack.c.h.bf16 %v610
      %s613 = scalar_lea.vmem %s200, 500
      %s614 = scalar_lea.vmem %s613, 4294967292
      %v615 = vpack.c.bf16 %v611, %v358
      %616 = vst [vmem:[%s614] sm:$0xff] %v615
      %s617 = scalar_lea.vmem %s178, 8
      %v618 = vld [vmem:[%s617] sm:$0xf]
      %v619 = vunpack.c.l.bf16 %v618
      %v620 = vunpack.c.h.bf16 %v618
      %s621 = scalar_lea.vmem %s200, 8
      %s622 = scalar_lea.vmem %s178, 24
      %v623 = vld [vmem:[%s622] sm:$0xf]
      %v624 = vunpack.c.l.bf16 %v623
      %v625 = vunpack.c.h.bf16 %v623
      %s626 = scalar_lea.vmem %s200, 24
      %s627 = scalar_lea.vmem %s178, 40
      %v628 = vld [vmem:[%s627] sm:$0xf]
      %v629 = vunpack.c.l.bf16 %v628
      %v630 = vunpack.c.h.bf16 %v628
      %s631 = scalar_lea.vmem %s200, 40
      %s632 = scalar_lea.vmem %s178, 56
      %v633 = vld [vmem:[%s632] sm:$0xf]
      %v634 = vunpack.c.l.bf16 %v633
      %v635 = vunpack.c.h.bf16 %v633
      %s636 = scalar_lea.vmem %s200, 56
      %s637 = scalar_lea.vmem %s178, 72
      %v638 = vld [vmem:[%s637] sm:$0xf]
      %v639 = vunpack.c.l.bf16 %v638
      %v640 = vunpack.c.h.bf16 %v638
      %s641 = scalar_lea.vmem %s200, 72
      %s642 = scalar_lea.vmem %s178, 88
      %v643 = vld [vmem:[%s642] sm:$0xf]
      %v644 = vunpack.c.l.bf16 %v643
      %v645 = vunpack.c.h.bf16 %v643
      %s646 = scalar_lea.vmem %s200, 88
      %s647 = scalar_lea.vmem %s178, 104
      %v648 = vld [vmem:[%s647] sm:$0xf]
      %v649 = vunpack.c.l.bf16 %v648
      %v650 = vunpack.c.h.bf16 %v648
      %s651 = scalar_lea.vmem %s200, 104
      %s652 = scalar_lea.vmem %s178, 120
      %v653 = vld [vmem:[%s652] sm:$0xf]
      %v654 = vunpack.c.l.bf16 %v653
      %v655 = vunpack.c.h.bf16 %v653
      %s656 = scalar_lea.vmem %s200, 120
      %s657 = scalar_lea.vmem %s178, 136
      %v658 = vld [vmem:[%s657] sm:$0xf]
      %v659 = vunpack.c.l.bf16 %v658
      %v660 = vunpack.c.h.bf16 %v658
      %s661 = scalar_lea.vmem %s200, 136
      %s662 = scalar_lea.vmem %s178, 152
      %v663 = vld [vmem:[%s662] sm:$0xf]
      %v664 = vunpack.c.l.bf16 %v663
      %v665 = vunpack.c.h.bf16 %v663
      %s666 = scalar_lea.vmem %s200, 152
      %s667 = scalar_lea.vmem %s178, 168
      %v668 = vld [vmem:[%s667] sm:$0xf]
      %v669 = vunpack.c.l.bf16 %v668
      %v670 = vunpack.c.h.bf16 %v668
      %s671 = scalar_lea.vmem %s200, 168
      %s672 = scalar_lea.vmem %s178, 184
      %v673 = vld [vmem:[%s672] sm:$0xf]
      %v674 = vunpack.c.l.bf16 %v673
      %v675 = vunpack.c.h.bf16 %v673
      %s676 = scalar_lea.vmem %s200, 184
      %s677 = scalar_lea.vmem %s178, 200
      %v678 = vld [vmem:[%s677] sm:$0xf]
      %v679 = vunpack.c.l.bf16 %v678
      %v680 = vunpack.c.h.bf16 %v678
      %s681 = scalar_lea.vmem %s200, 200
      %s682 = scalar_lea.vmem %s178, 216
      %v683 = vld [vmem:[%s682] sm:$0xf]
      %v684 = vunpack.c.l.bf16 %v683
      %v685 = vunpack.c.h.bf16 %v683
      %s686 = scalar_lea.vmem %s200, 216
      %s687 = scalar_lea.vmem %s178, 232
      %v688 = vld [vmem:[%s687] sm:$0xf]
      %v689 = vunpack.c.l.bf16 %v688
      %v690 = vunpack.c.h.bf16 %v688
      %s691 = scalar_lea.vmem %s200, 232
      %s692 = scalar_lea.vmem %s178, 248
      %v693 = vld [vmem:[%s692] sm:$0xf]
      %v694 = vunpack.c.l.bf16 %v693
      %v695 = vunpack.c.h.bf16 %v693
      %s696 = scalar_lea.vmem %s200, 248
      %s697 = scalar_lea.vmem %s178, 264
      %v698 = vld [vmem:[%s697] sm:$0xf]
      %v699 = vunpack.c.l.bf16 %v698
      %v700 = vunpack.c.h.bf16 %v698
      %s701 = scalar_lea.vmem %s200, 264
      %s702 = scalar_lea.vmem %s178, 280
      %v703 = vld [vmem:[%s702] sm:$0xf]
      %v704 = vunpack.c.l.bf16 %v703
      %v705 = vunpack.c.h.bf16 %v703
      %s706 = scalar_lea.vmem %s200, 280
      %s707 = scalar_lea.vmem %s178, 296
      %v708 = vld [vmem:[%s707] sm:$0xf]
      %v709 = vunpack.c.l.bf16 %v708
      %v710 = vunpack.c.h.bf16 %v708
      %s711 = scalar_lea.vmem %s200, 296
      %s712 = scalar_lea.vmem %s178, 312
      %v713 = vld [vmem:[%s712] sm:$0xf]
      %v714 = vunpack.c.l.bf16 %v713
      %v715 = vunpack.c.h.bf16 %v713
      %s716 = scalar_lea.vmem %s200, 312
      %s717 = scalar_lea.vmem %s178, 328
      %v718 = vld [vmem:[%s717] sm:$0xf]
      %v719 = vunpack.c.l.bf16 %v718
      %v720 = vunpack.c.h.bf16 %v718
      %s721 = scalar_lea.vmem %s200, 328
      %s722 = scalar_lea.vmem %s178, 344
      %v723 = vld [vmem:[%s722] sm:$0xf]
      %v724 = vunpack.c.l.bf16 %v723
      %v725 = vunpack.c.h.bf16 %v723
      %s726 = scalar_lea.vmem %s200, 344
      %s727 = scalar_lea.vmem %s178, 360
      %v728 = vld [vmem:[%s727] sm:$0xf]
      %v729 = vunpack.c.l.bf16 %v728
      %v730 = vunpack.c.h.bf16 %v728
      %s731 = scalar_lea.vmem %s200, 360
      %s732 = scalar_lea.vmem %s178, 376
      %v733 = vld [vmem:[%s732] sm:$0xf]
      %v734 = vunpack.c.l.bf16 %v733
      %v735 = vunpack.c.h.bf16 %v733
      %s736 = scalar_lea.vmem %s200, 376
      %s737 = scalar_lea.vmem %s178, 392
      %v738 = vld [vmem:[%s737] sm:$0xf]
      %v739 = vunpack.c.l.bf16 %v738
      %v740 = vunpack.c.h.bf16 %v738
      %s741 = scalar_lea.vmem %s200, 392
      %s742 = scalar_lea.vmem %s178, 408
      %v743 = vld [vmem:[%s742] sm:$0xf]
      %v744 = vunpack.c.l.bf16 %v743
      %v745 = vunpack.c.h.bf16 %v743
      %s746 = scalar_lea.vmem %s200, 408
      %s747 = scalar_lea.vmem %s178, 424
      %v748 = vld [vmem:[%s747] sm:$0xf]
      %v749 = vunpack.c.l.bf16 %v748
      %v750 = vunpack.c.h.bf16 %v748
      %s751 = scalar_lea.vmem %s200, 424
      %s752 = scalar_lea.vmem %s178, 440
      %v753 = vld [vmem:[%s752] sm:$0xf]
      %v754 = vunpack.c.l.bf16 %v753
      %v755 = vunpack.c.h.bf16 %v753
      %s756 = scalar_lea.vmem %s200, 440
      %s757 = scalar_lea.vmem %s178, 456
      %v758 = vld [vmem:[%s757] sm:$0xf]
      %v759 = vunpack.c.l.bf16 %v758
      %v760 = vunpack.c.h.bf16 %v758
      %s761 = scalar_lea.vmem %s200, 456
      %s762 = scalar_lea.vmem %s178, 472
      %v763 = vld [vmem:[%s762] sm:$0xf]
      %v764 = vunpack.c.l.bf16 %v763
      %v765 = vunpack.c.h.bf16 %v763
      %s766 = scalar_lea.vmem %s200, 472
      %s767 = scalar_lea.vmem %s178, 488
      %v768 = vld [vmem:[%s767] sm:$0xf]
      %v769 = vunpack.c.l.bf16 %v768
      %v770 = vunpack.c.h.bf16 %v768
      %s771 = scalar_lea.vmem %s200, 488
      %s772 = scalar_lea.vmem %s178, 504
      %v773 = vld [vmem:[%s772] sm:$0xf]
      %v774 = vunpack.c.l.bf16 %v773
      %v775 = vunpack.c.h.bf16 %v773
      %s776 = scalar_lea.vmem %s200, 504
      %s777 = scalar_lea.vmem %s178, 12
      %v778 = vld [vmem:[%s777] sm:$0xf]
      %v779 = vunpack.c.l.bf16 %v778
      %v780 = vunpack.c.h.bf16 %v778
      %s781 = scalar_lea.vmem %s200, 12
      %s782 = scalar_lea.vmem %s781, 4294967292
      %v783 = vpack.c.bf16 %v779, %v619
      %784 = vst [vmem:[%s782] sm:$0xff] %v783
      %s785 = scalar_lea.vmem %s178, 28
      %v786 = vld [vmem:[%s785] sm:$0xf]
      %v787 = vunpack.c.l.bf16 %v786
      %v788 = vunpack.c.h.bf16 %v786
      %s789 = scalar_lea.vmem %s200, 28
      %s790 = scalar_lea.vmem %s789, 4294967292
      %v791 = vpack.c.bf16 %v787, %v624
      %792 = vst [vmem:[%s790] sm:$0xff] %v791
      %s793 = scalar_lea.vmem %s178, 44
      %v794 = vld [vmem:[%s793] sm:$0xf]
      %v795 = vunpack.c.l.bf16 %v794
      %v796 = vunpack.c.h.bf16 %v794
      %s797 = scalar_lea.vmem %s200, 44
      %s798 = scalar_lea.vmem %s797, 4294967292
      %v799 = vpack.c.bf16 %v795, %v629
      %800 = vst [vmem:[%s798] sm:$0xff] %v799
      %s801 = scalar_lea.vmem %s178, 60
      %v802 = vld [vmem:[%s801] sm:$0xf]
      %v803 = vunpack.c.l.bf16 %v802
      %v804 = vunpack.c.h.bf16 %v802
      %s805 = scalar_lea.vmem %s200, 60
      %s806 = scalar_lea.vmem %s805, 4294967292
      %v807 = vpack.c.bf16 %v803, %v634
      %808 = vst [vmem:[%s806] sm:$0xff] %v807
      %s809 = scalar_lea.vmem %s178, 76
      %v810 = vld [vmem:[%s809] sm:$0xf]
      %v811 = vunpack.c.l.bf16 %v810
      %v812 = vunpack.c.h.bf16 %v810
      %s813 = scalar_lea.vmem %s200, 76
      %s814 = scalar_lea.vmem %s813, 4294967292
      %v815 = vpack.c.bf16 %v811, %v639
      %816 = vst [vmem:[%s814] sm:$0xff] %v815
      %s817 = scalar_lea.vmem %s178, 92
      %v818 = vld [vmem:[%s817] sm:$0xf]
      %v819 = vunpack.c.l.bf16 %v818
      %v820 = vunpack.c.h.bf16 %v818
      %s821 = scalar_lea.vmem %s200, 92
      %s822 = scalar_lea.vmem %s821, 4294967292
      %v823 = vpack.c.bf16 %v819, %v644
      %824 = vst [vmem:[%s822] sm:$0xff] %v823
      %s825 = scalar_lea.vmem %s178, 108
      %v826 = vld [vmem:[%s825] sm:$0xf]
      %v827 = vunpack.c.l.bf16 %v826
      %v828 = vunpack.c.h.bf16 %v826
      %s829 = scalar_lea.vmem %s200, 108
      %s830 = scalar_lea.vmem %s829, 4294967292
      %v831 = vpack.c.bf16 %v827, %v649
      %832 = vst [vmem:[%s830] sm:$0xff] %v831
      %s833 = scalar_lea.vmem %s178, 124
      %v834 = vld [vmem:[%s833] sm:$0xf]
      %v835 = vunpack.c.l.bf16 %v834
      %v836 = vunpack.c.h.bf16 %v834
      %s837 = scalar_lea.vmem %s200, 124
      %s838 = scalar_lea.vmem %s837, 4294967292
      %v839 = vpack.c.bf16 %v835, %v654
      %840 = vst [vmem:[%s838] sm:$0xff] %v839
      %s841 = scalar_lea.vmem %s178, 140
      %v842 = vld [vmem:[%s841] sm:$0xf]
      %v843 = vunpack.c.l.bf16 %v842
      %v844 = vunpack.c.h.bf16 %v842
      %s845 = scalar_lea.vmem %s200, 140
      %s846 = scalar_lea.vmem %s845, 4294967292
      %v847 = vpack.c.bf16 %v843, %v659
      %848 = vst [vmem:[%s846] sm:$0xff] %v847
      %s849 = scalar_lea.vmem %s178, 156
      %v850 = vld [vmem:[%s849] sm:$0xf]
      %v851 = vunpack.c.l.bf16 %v850
      %v852 = vunpack.c.h.bf16 %v850
      %s853 = scalar_lea.vmem %s200, 156
      %s854 = scalar_lea.vmem %s853, 4294967292
      %v855 = vpack.c.bf16 %v851, %v664
      %856 = vst [vmem:[%s854] sm:$0xff] %v855
      %s857 = scalar_lea.vmem %s178, 172
      %v858 = vld [vmem:[%s857] sm:$0xf]
      %v859 = vunpack.c.l.bf16 %v858
      %v860 = vunpack.c.h.bf16 %v858
      %s861 = scalar_lea.vmem %s200, 172
      %s862 = scalar_lea.vmem %s861, 4294967292
      %v863 = vpack.c.bf16 %v859, %v669
      %864 = vst [vmem:[%s862] sm:$0xff] %v863
      %s865 = scalar_lea.vmem %s178, 188
      %v866 = vld [vmem:[%s865] sm:$0xf]
      %v867 = vunpack.c.l.bf16 %v866
      %v868 = vunpack.c.h.bf16 %v866
      %s869 = scalar_lea.vmem %s200, 188
      %s870 = scalar_lea.vmem %s869, 4294967292
      %v871 = vpack.c.bf16 %v867, %v674
      %872 = vst [vmem:[%s870] sm:$0xff] %v871
      %s873 = scalar_lea.vmem %s178, 204
      %v874 = vld [vmem:[%s873] sm:$0xf]
      %v875 = vunpack.c.l.bf16 %v874
      %v876 = vunpack.c.h.bf16 %v874
      %s877 = scalar_lea.vmem %s200, 204
      %s878 = scalar_lea.vmem %s877, 4294967292
      %v879 = vpack.c.bf16 %v875, %v679
      %880 = vst [vmem:[%s878] sm:$0xff] %v879
      %s881 = scalar_lea.vmem %s178, 220
      %v882 = vld [vmem:[%s881] sm:$0xf]
      %v883 = vunpack.c.l.bf16 %v882
      %v884 = vunpack.c.h.bf16 %v882
      %s885 = scalar_lea.vmem %s200, 220
      %s886 = scalar_lea.vmem %s885, 4294967292
      %v887 = vpack.c.bf16 %v883, %v684
      %888 = vst [vmem:[%s886] sm:$0xff] %v887
      %s889 = scalar_lea.vmem %s178, 236
      %v890 = vld [vmem:[%s889] sm:$0xf]
      %v891 = vunpack.c.l.bf16 %v890
      %v892 = vunpack.c.h.bf16 %v890
      %s893 = scalar_lea.vmem %s200, 236
      %s894 = scalar_lea.vmem %s893, 4294967292
      %v895 = vpack.c.bf16 %v891, %v689
      %896 = vst [vmem:[%s894] sm:$0xff] %v895
      %s897 = scalar_lea.vmem %s178, 252
      %v898 = vld [vmem:[%s897] sm:$0xf]
      %v899 = vunpack.c.l.bf16 %v898
      %v900 = vunpack.c.h.bf16 %v898
      %s901 = scalar_lea.vmem %s200, 252
      %s902 = scalar_lea.vmem %s901, 4294967292
      %v903 = vpack.c.bf16 %v899, %v694
      %904 = vst [vmem:[%s902] sm:$0xff] %v903
      %s905 = scalar_lea.vmem %s178, 268
      %v906 = vld [vmem:[%s905] sm:$0xf]
      %v907 = vunpack.c.l.bf16 %v906
      %v908 = vunpack.c.h.bf16 %v906
      %s909 = scalar_lea.vmem %s200, 268
      %s910 = scalar_lea.vmem %s909, 4294967292
      %v911 = vpack.c.bf16 %v907, %v699
      %912 = vst [vmem:[%s910] sm:$0xff] %v911
      %s913 = scalar_lea.vmem %s178, 284
      %v914 = vld [vmem:[%s913] sm:$0xf]
      %v915 = vunpack.c.l.bf16 %v914
      %v916 = vunpack.c.h.bf16 %v914
      %s917 = scalar_lea.vmem %s200, 284
      %s918 = scalar_lea.vmem %s917, 4294967292
      %v919 = vpack.c.bf16 %v915, %v704
      %920 = vst [vmem:[%s918] sm:$0xff] %v919
      %s921 = scalar_lea.vmem %s178, 300
      %v922 = vld [vmem:[%s921] sm:$0xf]
      %v923 = vunpack.c.l.bf16 %v922
      %v924 = vunpack.c.h.bf16 %v922
      %s925 = scalar_lea.vmem %s200, 300
      %s926 = scalar_lea.vmem %s925, 4294967292
      %v927 = vpack.c.bf16 %v923, %v709
      %928 = vst [vmem:[%s926] sm:$0xff] %v927
      %s929 = scalar_lea.vmem %s178, 316
      %v930 = vld [vmem:[%s929] sm:$0xf]
      %v931 = vunpack.c.l.bf16 %v930
      %v932 = vunpack.c.h.bf16 %v930
      %s933 = scalar_lea.vmem %s200, 316
      %s934 = scalar_lea.vmem %s933, 4294967292
      %v935 = vpack.c.bf16 %v931, %v714
      %936 = vst [vmem:[%s934] sm:$0xff] %v935
      %s937 = scalar_lea.vmem %s178, 332
      %v938 = vld [vmem:[%s937] sm:$0xf]
      %v939 = vunpack.c.l.bf16 %v938
      %v940 = vunpack.c.h.bf16 %v938
      %s941 = scalar_lea.vmem %s200, 332
      %s942 = scalar_lea.vmem %s941, 4294967292
      %v943 = vpack.c.bf16 %v939, %v719
      %944 = vst [vmem:[%s942] sm:$0xff] %v943
      %s945 = scalar_lea.vmem %s178, 348
      %v946 = vld [vmem:[%s945] sm:$0xf]
      %v947 = vunpack.c.l.bf16 %v946
      %v948 = vunpack.c.h.bf16 %v946
      %s949 = scalar_lea.vmem %s200, 348
      %s950 = scalar_lea.vmem %s949, 4294967292
      %v951 = vpack.c.bf16 %v947, %v724
      %952 = vst [vmem:[%s950] sm:$0xff] %v951
      %s953 = scalar_lea.vmem %s178, 364
      %v954 = vld [vmem:[%s953] sm:$0xf]
      %v955 = vunpack.c.l.bf16 %v954
      %v956 = vunpack.c.h.bf16 %v954
      %s957 = scalar_lea.vmem %s200, 364
      %s958 = scalar_lea.vmem %s957, 4294967292
      %v959 = vpack.c.bf16 %v955, %v729
      %960 = vst [vmem:[%s958] sm:$0xff] %v959
      %s961 = scalar_lea.vmem %s178, 380
      %v962 = vld [vmem:[%s961] sm:$0xf]
      %v963 = vunpack.c.l.bf16 %v962
      %v964 = vunpack.c.h.bf16 %v962
      %s965 = scalar_lea.vmem %s200, 380
      %s966 = scalar_lea.vmem %s965, 4294967292
      %v967 = vpack.c.bf16 %v963, %v734
      %968 = vst [vmem:[%s966] sm:$0xff] %v967
      %s969 = scalar_lea.vmem %s178, 396
      %v970 = vld [vmem:[%s969] sm:$0xf]
      %v971 = vunpack.c.l.bf16 %v970
      %v972 = vunpack.c.h.bf16 %v970
      %s973 = scalar_lea.vmem %s200, 396
      %s974 = scalar_lea.vmem %s973, 4294967292
      %v975 = vpack.c.bf16 %v971, %v739
      %976 = vst [vmem:[%s974] sm:$0xff] %v975
      %s977 = scalar_lea.vmem %s178, 412
      %v978 = vld [vmem:[%s977] sm:$0xf]
      %v979 = vunpack.c.l.bf16 %v978
      %v980 = vunpack.c.h.bf16 %v978
      %s981 = scalar_lea.vmem %s200, 412
      %s982 = scalar_lea.vmem %s981, 4294967292
      %v983 = vpack.c.bf16 %v979, %v744
      %984 = vst [vmem:[%s982] sm:$0xff] %v983
      %s985 = scalar_lea.vmem %s178, 428
      %v986 = vld [vmem:[%s985] sm:$0xf]
      %v987 = vunpack.c.l.bf16 %v986
      %v988 = vunpack.c.h.bf16 %v986
      %s989 = scalar_lea.vmem %s200, 428
      %s990 = scalar_lea.vmem %s989, 4294967292
      %v991 = vpack.c.bf16 %v987, %v749
      %992 = vst [vmem:[%s990] sm:$0xff] %v991
      %s993 = scalar_lea.vmem %s178, 444
      %v994 = vld [vmem:[%s993] sm:$0xf]
      %v995 = vunpack.c.l.bf16 %v994
      %v996 = vunpack.c.h.bf16 %v994
      %s997 = scalar_lea.vmem %s200, 444
      %s998 = scalar_lea.vmem %s997, 4294967292
      %v999 = vpack.c.bf16 %v995, %v754
      %1000 = vst [vmem:[%s998] sm:$0xff] %v999
      %s1001 = scalar_lea.vmem %s178, 460
      %v1002 = vld [vmem:[%s1001] sm:$0xf]
      %v1003 = vunpack.c.l.bf16 %v1002
      %v1004 = vunpack.c.h.bf16 %v1002
      %s1005 = scalar_lea.vmem %s200, 460
      %s1006 = scalar_lea.vmem %s1005, 4294967292
      %v1007 = vpack.c.bf16 %v1003, %v759
      %1008 = vst [vmem:[%s1006] sm:$0xff] %v1007
      %s1009 = scalar_lea.vmem %s178, 476
      %v1010 = vld [vmem:[%s1009] sm:$0xf]
      %v1011 = vunpack.c.l.bf16 %v1010
      %v1012 = vunpack.c.h.bf16 %v1010
      %s1013 = scalar_lea.vmem %s200, 476
      %s1014 = scalar_lea.vmem %s1013, 4294967292
      %v1015 = vpack.c.bf16 %v1011, %v764
      %1016 = vst [vmem:[%s1014] sm:$0xff] %v1015
      %s1017 = scalar_lea.vmem %s178, 492
      %v1018 = vld [vmem:[%s1017] sm:$0xf]
      %v1019 = vunpack.c.l.bf16 %v1018
      %v1020 = vunpack.c.h.bf16 %v1018
      %s1021 = scalar_lea.vmem %s200, 492
      %s1022 = scalar_lea.vmem %s1021, 4294967292
      %v1023 = vpack.c.bf16 %v1019, %v769
      %1024 = vst [vmem:[%s1022] sm:$0xff] %v1023
      %s1025 = scalar_lea.vmem %s178, 508
      %v1026 = vld [vmem:[%s1025] sm:$0xf]
      %v1027 = vunpack.c.l.bf16 %v1026
      %v1028 = vunpack.c.h.bf16 %v1026
      %s1029 = scalar_lea.vmem %s200, 508
      %s1030 = scalar_lea.vmem %s1029, 4294967292
      %v1031 = vpack.c.bf16 %v1027, %v774
      %1032 = vst [vmem:[%s1030] sm:$0xff] %v1031
      %s1033 = smul.u32 32, %s40
      %s1034 = smul.u32 4, %s41
      %p1035 = scmp.lt.s32.totalorder %s38, 2
      %s1036 = scalar_select %p1035, %s38, 2
      %p1037 = scmp.lt.s32.totalorder %s39, 2
      %s1038 = scalar_select %p1037, %s39, 2
      %p1039 = scmp.lt.s32.totalorder %s1033, 63
      %s1040 = scalar_select %p1039, %s1033, 63
      %p1041 = scmp.lt.s32.totalorder %s1034, 3
      %s1042 = scalar_select %p1041, %s1034, 3
      %s1043 = smul.addr %s1040, 4
      %s1044 = sadd.s32 %s1042, %s1043
      %s1045 = smul.addr %s1038, 256
      %s1046 = sadd.s32 %s1044, %s1045
      %s1047 = smul.addr %s1036, 768
      %s1048 = sadd.s32 %s1046, %s1047
      %s1049 = smul.addr %s1048, 4
      %s1050 = scalar_lea.vmem %s1, %s1049
      %s1051 = smul.u32 32, %s40
      %s1052 = smul.u32 4, %s41
    $region20: #{reverse} parent=5 // pred_fallthru
      _
    %p1053 = scmp.le.s32.totalorder 10, %s3
    // Predicated region
    $region21: #{reverse} parent=5 // pred_check
      %p1054 = pneg %p1053
    $region22: #{reverse} parent=5 // pred_check_branch
      %1056 = sbr.rel (%p1054) target = $region24
    $region23: #{reverse} parent=5 // pred_region
      %s1057 = ssub.s32 %s3, 10
      %s1058 = smul.u32 32, %s60
      %s1059 = smul.u32 4, %s61
      %p1060 = scmp.lt.s32.totalorder %s58, 2
      %s1061 = scalar_select %p1060, %s58, 2
      %p1062 = scmp.lt.s32.totalorder %s59, 2
      %s1063 = scalar_select %p1062, %s59, 2
      %p1064 = scmp.lt.s32.totalorder %s1058, 63
      %s1065 = scalar_select %p1064, %s1058, 63
      %p1066 = scmp.lt.s32.totalorder %s1059, 3
      %s1067 = scalar_select %p1066, %s1059, 3
      %s1068 = smul.addr %s1065, 4
      %s1069 = sadd.s32 %s1067, %s1068
      %s1070 = smul.addr %s1063, 256
      %s1071 = sadd.s32 %s1069, %s1070
      %s1072 = smul.addr %s1061, 768
      %s1073 = sadd.s32 %s1071, %s1072
      %s1074 = smul.addr %s1073, 4
      %s1075 = scalar_lea.vmem %s1, %s1074
    $region24: #{reverse} parent=5 // pred_fallthru
      _
  $region6: #{reverse} parent=0 // loop_footer
    %s7 = sadd.s32 1, %s3
  $region7: #{reverse} parent=0 // loop_footer_branch
    %2 = sbr.rel target = $region3
  $region8: #{reverse} parent=0 // loop_exit
    _

// kernel: resnet18_forward.1
$region0: #{resnet18_forward.1}
  #allocation0 [shape = 'u32[]', space=smem, size = 0x4, offset = 0x4, fixed_abs, tag = 'smem constant byte address 0x4 - core index']
  #allocation1 [shape = 'u32[72,128]{1,0:T(1,128)}', space=vmem, size = 0x9000, scoped, tag = 'internal scratch']
  %s0 = inlined_call_operand.vmem [shape: bf16[2,4,512], index: 0, kind: input, shape index: {}]
  %s1 = inlined_call_operand.vmem [shape: bf16[512,128], index: 1, kind: input, shape index: {}]
  %s2 = inlined_call_operand.vmem [shape: f32[1,128], index: 2, kind: input, shape index: {}]
  %s3 = inlined_call_operand.hbm [shape: f32[2,128], index: 3, kind: output, shape index: {}]
  %s4 = sld [smem:[#allocation0]]
  $region22: #{resnet18_forward.1} parent=0
    _
  %s6 = ssub.s32 1, %s4
  %s7 = scalar_select 0, %s6, %s4
  $region1: #{resnet18_forward.1} parent=0
    #allocation2 [shape = 'u8[1024]{0}', space=vmem, size = 0x400, scoped, tag = 'output window, operand 0, single buffered']
    #allocation3 [shape = 's32[1]{0}', space=sflag, size = 0x4, scoped, tag = 'scoped memory for resnet18_forward.1']
    %8 = vsyncpa [#allocation3], 0
    // Predicated region
    $region2: #{resnet18_forward.1} parent=1 // pred_check
      _
    $region3: #{resnet18_forward.1} parent=1 // pred_check_branch
      %10 = sbr.rel (0) target = $region5
    $region4: #{resnet18_forward.1} parent=1 // pred_region
      _
    $region5: #{resnet18_forward.1} parent=1 // pred_fallthru
      _
    // Predicated region
    $region6: #{resnet18_forward.1} parent=1 // pred_check
      _
    $region7: #{resnet18_forward.1} parent=1 // pred_check_branch
      %12 = sbr.rel (0) target = $region9
    $region8: #{resnet18_forward.1} parent=1 // pred_region
      _
    $region9: #{resnet18_forward.1} parent=1 // pred_fallthru
      _
    // Predicated region
    $region10: #{resnet18_forward.1} parent=1 // pred_check
      _
    $region11: #{resnet18_forward.1} parent=1 // pred_check_branch
      %14 = sbr.rel (0) target = $region13
    $region12: #{resnet18_forward.1} parent=1 // pred_region
      _
    $region13: #{resnet18_forward.1} parent=1 // pred_fallthru
      _
    %v15 = vld [vmem:[%s0] sm:$0xff]
    %v16 = vld [vmem:[%s0 + $0x8] sm:$0xff]
    %v17 = vunpack.c.l.bf16 %v15
    %v18 = vunpack.c.h.bf16 %v15
    %v19 = vunpack.c.l.bf16 %v16
    %v20 = vunpack.c.h.bf16 %v16
    %vm21 = vcmp.ge.f32.partialorder %v17, 0.0
    %vm22 = vcmp.ge.f32.partialorder %v18, 0.0
    %vm23 = vcmp.ge.f32.partialorder %v19, 0.0
    %vm24 = vcmp.ge.f32.partialorder %v20, 0.0
    %v25 = vmul.f32 %v17, 0.01
    %v26 = vmul.f32 %v18, 0.01
    %v27 = vmul.f32 %v19, 0.01
    %v28 = vmul.f32 %v20, 0.01
    %v29 = vsel %vm21, %v17, %v25
    %v30 = vsel %vm22, %v18, %v26
    %v31 = vsel %vm23, %v19, %v27
    %v32 = vsel %vm24, %v20, %v28
    %37 = vst [vmem:[#allocation1] ss:$2 sm:$0xff] %v29
    %s38 = scalar_lea.vmem [#allocation1], 16
    %39 = vst [vmem:[%s38] ss:$2 sm:$0xff] %v30
    %v40 = vld.sshfl [vmem:[#allocation1] sm:$0xff pattern:$0x75316420]
    %v41 = vld.sshfl [vmem:[#allocation1 + $0x8] sm:$0xff pattern:$0x75316420]
    %v42 = vld.sshfl [vmem:[#allocation1 + $0x10] sm:$0xff pattern:$0x75316420]
    %v43 = vld.sshfl [vmem:[#allocation1 + $0x18] sm:$0xff pattern:$0x75316420]
    %s44 = scalar_lea.vmem [#allocation1], 32
    %45 = vst [vmem:[%s44] ss:$2 sm:$0xff] %v31
    %s46 = scalar_lea.vmem [#allocation1], 48
    %47 = vst [vmem:[%s46] ss:$2 sm:$0xff] %v32
    %v48 = vld.sshfl [vmem:[#allocation1 + $0x20] sm:$0xff pattern:$0x75316420]
    %v49 = vld.sshfl [vmem:[#allocation1 + $0x28] sm:$0xff pattern:$0x75316420]
    %v50 = vld.sshfl [vmem:[#allocation1 + $0x30] sm:$0xff pattern:$0x75316420]
    %v51 = vld.sshfl [vmem:[#allocation1 + $0x38] sm:$0xff pattern:$0x75316420]
    %vm60 = vcmask 1043456
    %v61 = vsel %vm60, %v40, 0.0
    %v62 = vrot.slane %v61, 4
    %v63 = vadd.f32 %v61, %v62
    %v64 = vrot.slane %v63, 2
    %v65 = vadd.f32 %v63, %v64
    %v66 = vrot.slane %v65, 1
    %v67 = vadd.f32 %v65, %v66
    %v68 = vsel %vm60, %v41, 0.0
    %v69 = vrot.slane %v68, 4
    %v70 = vadd.f32 %v68, %v69
    %v71 = vrot.slane %v70, 2
    %v72 = vadd.f32 %v70, %v71
    %v73 = vrot.slane %v72, 1
    %v74 = vadd.f32 %v72, %v73
    %v75 = vsel %vm60, %v42, 0.0
    %v76 = vrot.slane %v75, 4
    %v77 = vadd.f32 %v75, %v76
    %v78 = vrot.slane %v77, 2
    %v79 = vadd.f32 %v77, %v78
    %v80 = vrot.slane %v79, 1
    %v81 = vadd.f32 %v79, %v80
    %v82 = vsel %vm60, %v43, 0.0
    %v83 = vrot.slane %v82, 4
    %v84 = vadd.f32 %v82, %v83
    %v85 = vrot.slane %v84, 2
    %v86 = vadd.f32 %v84, %v85
    %v87 = vrot.slane %v86, 1
    %v88 = vadd.f32 %v86, %v87
    %v89 = vsel %vm60, %v48, 0.0
    %v90 = vrot.slane %v89, 4
    %v91 = vadd.f32 %v89, %v90
    %v92 = vrot.slane %v91, 2
    %v93 = vadd.f32 %v91, %v92
    %v94 = vrot.slane %v93, 1
    %v95 = vadd.f32 %v93, %v94
    %v96 = vsel %vm60, %v49, 0.0
    %v97 = vrot.slane %v96, 4
    %v98 = vadd.f32 %v96, %v97
    %v99 = vrot.slane %v98, 2
    %v100 = vadd.f32 %v98, %v99
    %v101 = vrot.slane %v100, 1
    %v102 = vadd.f32 %v100, %v101
    %v103 = vsel %vm60, %v50, 0.0
    %v104 = vrot.slane %v103, 4
    %v105 = vadd.f32 %v103, %v104
    %v106 = vrot.slane %v105, 2
    %v107 = vadd.f32 %v105, %v106
    %v108 = vrot.slane %v107, 1
    %v109 = vadd.f32 %v107, %v108
    %v110 = vsel %vm60, %v51, 0.0
    %v111 = vrot.slane %v110, 4
    %v112 = vadd.f32 %v110, %v111
    %v113 = vrot.slane %v112, 2
    %v114 = vadd.f32 %v112, %v113
    %v115 = vrot.slane %v114, 1
    %v116 = vadd.f32 %v114, %v115
    %v117 = vpack.c.bf16 %v67, %v67
    %v118 = vpack.c.bf16 %v74, %v74
    %v119 = vpack.c.bf16 %v81, %v81
    %v120 = vpack.c.bf16 %v88, %v88
    %v121 = vpack.c.bf16 %v95, %v95
    %v122 = vpack.c.bf16 %v102, %v102
    %v123 = vpack.c.bf16 %v109, %v109
    %v124 = vpack.c.bf16 %v116, %v116
    %v125 = vld [vmem:[%s1] sm:$0xf]
    %v126 = vld [vmem:[%s1 + $0x4] sm:$0xf]
    %v127 = vld [vmem:[%s1 + $0x8] sm:$0xf]
    %v128 = vld [vmem:[%s1 + $0xc] sm:$0xf]
    %v129 = vld [vmem:[%s1 + $0x10] sm:$0xf]
    %v130 = vld [vmem:[%s1 + $0x14] sm:$0xf]
    %v131 = vld [vmem:[%s1 + $0x18] sm:$0xf]
    %v132 = vld [vmem:[%s1 + $0x1c] sm:$0xf]
    %v133 = vld [vmem:[%s1 + $0x20] sm:$0xf]
    %v134 = vld [vmem:[%s1 + $0x24] sm:$0xf]
    %v135 = vld [vmem:[%s1 + $0x28] sm:$0xf]
    %v136 = vld [vmem:[%s1 + $0x2c] sm:$0xf]
    %v137 = vld [vmem:[%s1 + $0x30] sm:$0xf]
    %v138 = vld [vmem:[%s1 + $0x34] sm:$0xf]
    %v139 = vld [vmem:[%s1 + $0x38] sm:$0xf]
    %v140 = vld [vmem:[%s1 + $0x3c] sm:$0xf]
    %v141 = vld [vmem:[%s1 + $0x40] sm:$0xf]
    %v142 = vld [vmem:[%s1 + $0x44] sm:$0xf]
    %v143 = vld [vmem:[%s1 + $0x48] sm:$0xf]
    %v144 = vld [vmem:[%s1 + $0x4c] sm:$0xf]
    %v145 = vld [vmem:[%s1 + $0x50] sm:$0xf]
    %v146 = vld [vmem:[%s1 + $0x54] sm:$0xf]
    %v147 = vld [vmem:[%s1 + $0x58] sm:$0xf]
    %v148 = vld [vmem:[%s1 + $0x5c] sm:$0xf]
    %v149 = vld [vmem:[%s1 + $0x60] sm:$0xf]
    %v150 = vld [vmem:[%s1 + $0x64] sm:$0xf]
    %v151 = vld [vmem:[%s1 + $0x68] sm:$0xf]
    %v152 = vld [vmem:[%s1 + $0x6c] sm:$0xf]
    %v153 = vld [vmem:[%s1 + $0x70] sm:$0xf]
    %v154 = vld [vmem:[%s1 + $0x74] sm:$0xf]
    %v155 = vld [vmem:[%s1 + $0x78] sm:$0xf]
    %v156 = vld [vmem:[%s1 + $0x7c] sm:$0xf]
    %v157 = vld [vmem:[%s1 + $0x80] sm:$0xf]
    %v158 = vld [vmem:[%s1 + $0x84] sm:$0xf]
    %v159 = vld [vmem:[%s1 + $0x88] sm:$0xf]
    %v160 = vld [vmem:[%s1 + $0x8c] sm:$0xf]
    %v161 = vld [vmem:[%s1 + $0x90] sm:$0xf]
    %v162 = vld [vmem:[%s1 + $0x94] sm:$0xf]
    %v163 = vld [vmem:[%s1 + $0x98] sm:$0xf]
    %v164 = vld [vmem:[%s1 + $0x9c] sm:$0xf]
    %v165 = vld [vmem:[%s1 + $0xa0] sm:$0xf]
    %v166 = vld [vmem:[%s1 + $0xa4] sm:$0xf]
    %v167 = vld [vmem:[%s1 + $0xa8] sm:$0xf]
    %v168 = vld [vmem:[%s1 + $0xac] sm:$0xf]
    %v169 = vld [vmem:[%s1 + $0xb0] sm:$0xf]
    %v170 = vld [vmem:[%s1 + $0xb4] sm:$0xf]
    %v171 = vld [vmem:[%s1 + $0xb8] sm:$0xf]
    %v172 = vld [vmem:[%s1 + $0xbc] sm:$0xf]
    %v173 = vld [vmem:[%s1 + $0xc0] sm:$0xf]
    %v174 = vld [vmem:[%s1 + $0xc4] sm:$0xf]
    %v175 = vld [vmem:[%s1 + $0xc8] sm:$0xf]
    %v176 = vld [vmem:[%s1 + $0xcc] sm:$0xf]
    %v177 = vld [vmem:[%s1 + $0xd0] sm:$0xf]
    %v178 = vld [vmem:[%s1 + $0xd4] sm:$0xf]
    %v179 = vld [vmem:[%s1 + $0xd8] sm:$0xf]
    %v180 = vld [vmem:[%s1 + $0xdc] sm:$0xf]
    %v181 = vld [vmem:[%s1 + $0xe0] sm:$0xf]
    %v182 = vld [vmem:[%s1 + $0xe4] sm:$0xf]
    %v183 = vld [vmem:[%s1 + $0xe8] sm:$0xf]
    %v184 = vld [vmem:[%s1 + $0xec] sm:$0xf]
    %v185 = vld [vmem:[%s1 + $0xf0] sm:$0xf]
    %v186 = vld [vmem:[%s1 + $0xf4] sm:$0xf]
    %v187 = vld [vmem:[%s1 + $0xf8] sm:$0xf]
    %v188 = vld [vmem:[%s1 + $0xfc] sm:$0xf]
    %v189 = vld [vmem:[%s2] sm:$0x1]
    %v191 = vperm.slane %v189, 0
    %v201 = vunpack.c.l.b16 %v117
    %v202 = vunpack.c.l.b16 %v118
    %v203 = vunpack.c.l.b16 %v119
    %v204 = vunpack.c.l.b16 %v120
    %v205 = vunpack.c.l.b16 %v121
    %v206 = vunpack.c.l.b16 %v122
    %v207 = vunpack.c.l.b16 %v123
    %v208 = vunpack.c.l.b16 %v124
    %vm209 = vcmask 1041409
    %v210 = vsel %vm209, %v205, %v201
    %v211 = vsel %vm209, %v206, %v202
    %v212 = vsel %vm209, %v207, %v203
    %v213 = vsel %vm209, %v208, %v204
    %v214 = vpack.c.b16 %v210, %v210
    %v215 = vpack.c.b16 %v211, %v211
    %v216 = vpack.c.b16 %v212, %v212
    %v217 = vpack.c.b16 %v213, %v213
    %v286 = vunpack.c.l.b16 %v125
    %v287 = vunpack.c.l.b16 %v126
    %v288 = vunpack.c.l.b16 %v127
    %v289 = vunpack.c.l.b16 %v128
    %v290 = vunpack.c.l.b16 %v129
    %v291 = vunpack.c.l.b16 %v130
    %v292 = vunpack.c.l.b16 %v131
    %v293 = vunpack.c.l.b16 %v132
    %v294 = vunpack.c.l.b16 %v133
    %v295 = vunpack.c.l.b16 %v134
    %v296 = vunpack.c.l.b16 %v135
    %v297 = vunpack.c.l.b16 %v136
    %v298 = vunpack.c.l.b16 %v137
    %v299 = vunpack.c.l.b16 %v138
    %v300 = vunpack.c.l.b16 %v139
    %v301 = vunpack.c.l.b16 %v140
    %v302 = vunpack.c.l.b16 %v141
    %v303 = vunpack.c.l.b16 %v142
    %v304 = vunpack.c.l.b16 %v143
    %v305 = vunpack.c.l.b16 %v144
    %v306 = vunpack.c.l.b16 %v145
    %v307 = vunpack.c.l.b16 %v146
    %v308 = vunpack.c.l.b16 %v147
    %v309 = vunpack.c.l.b16 %v148
    %v310 = vunpack.c.l.b16 %v149
    %v311 = vunpack.c.l.b16 %v150
    %v312 = vunpack.c.l.b16 %v151
    %v313 = vunpack.c.l.b16 %v152
    %v314 = vunpack.c.l.b16 %v153
    %v315 = vunpack.c.l.b16 %v154
    %v316 = vunpack.c.l.b16 %v155
    %v317 = vunpack.c.l.b16 %v156
    %v318 = vunpack.c.l.b16 %v157
    %v319 = vunpack.c.l.b16 %v158
    %v320 = vunpack.c.l.b16 %v159
    %v321 = vunpack.c.l.b16 %v160
    %v322 = vunpack.c.l.b16 %v161
    %v323 = vunpack.c.l.b16 %v162
    %v324 = vunpack.c.l.b16 %v163
    %v325 = vunpack.c.l.b16 %v164
    %v326 = vunpack.c.l.b16 %v165
    %v327 = vunpack.c.l.b16 %v166
    %v328 = vunpack.c.l.b16 %v167
    %v329 = vunpack.c.l.b16 %v168
    %v330 = vunpack.c.l.b16 %v169
    %v331 = vunpack.c.l.b16 %v170
    %v332 = vunpack.c.l.b16 %v171
    %v333 = vunpack.c.l.b16 %v172
    %v334 = vunpack.c.l.b16 %v173
    %v335 = vunpack.c.l.b16 %v174
    %v336 = vunpack.c.l.b16 %v175
    %v337 = vunpack.c.l.b16 %v176
    %v338 = vunpack.c.l.b16 %v177
    %v339 = vunpack.c.l.b16 %v178
    %v340 = vunpack.c.l.b16 %v179
    %v341 = vunpack.c.l.b16 %v180
    %v342 = vunpack.c.l.b16 %v181
    %v343 = vunpack.c.l.b16 %v182
    %v344 = vunpack.c.l.b16 %v183
    %v345 = vunpack.c.l.b16 %v184
    %v346 = vunpack.c.l.b16 %v185
    %v347 = vunpack.c.l.b16 %v186
    %v348 = vunpack.c.l.b16 %v187
    %v349 = vunpack.c.l.b16 %v188
    %v350 = vpack.c.b16 %v287, %v286
    %v351 = vpack.c.b16 %v289, %v288
    %v352 = vpack.c.b16 %v291, %v290
    %v353 = vpack.c.b16 %v293, %v292
    %v354 = vpack.c.b16 %v295, %v294
    %v355 = vpack.c.b16 %v297, %v296
    %v356 = vpack.c.b16 %v299, %v298
    %v357 = vpack.c.b16 %v301, %v300
    %v358 = vpack.c.b16 %v303, %v302
    %v359 = vpack.c.b16 %v305, %v304
    %v360 = vpack.c.b16 %v307, %v306
    %v361 = vpack.c.b16 %v309, %v308
    %v362 = vpack.c.b16 %v311, %v310
    %v363 = vpack.c.b16 %v313, %v312
    %v364 = vpack.c.b16 %v315, %v314
    %v365 = vpack.c.b16 %v317, %v316
    %v366 = vpack.c.b16 %v319, %v318
    %v367 = vpack.c.b16 %v321, %v320
    %v368 = vpack.c.b16 %v323, %v322
    %v369 = vpack.c.b16 %v325, %v324
    %v370 = vpack.c.b16 %v327, %v326
    %v371 = vpack.c.b16 %v329, %v328
    %v372 = vpack.c.b16 %v331, %v330
    %v373 = vpack.c.b16 %v333, %v332
    %v374 = vpack.c.b16 %v335, %v334
    %v375 = vpack.c.b16 %v337, %v336
    %v376 = vpack.c.b16 %v339, %v338
    %v377 = vpack.c.b16 %v341, %v340
    %v378 = vpack.c.b16 %v343, %v342
    %v379 = vpack.c.b16 %v345, %v344
    %v380 = vpack.c.b16 %v347, %v346
    %v381 = vpack.c.b16 %v349, %v348
    %414 = vmatpush.bf16.msra.mxu0 %v357
    %415 = vmatpush.bf16.msra.mxu0 %v356
    %416 = vmatpush.bf16.msra.mxu0 %v355
    %417 = vmatpush.bf16.msra.mxu0 %v354
    %418 = vmatpush.bf16.msra.mxu0 %v353
    %419 = vmatpush.bf16.msra.mxu0 %v352
    %420 = vmatpush.bf16.msra.mxu0 %v351
    %421 = vmatpush.bf16.msra.mxu0 %v350
    %422 = vmatmul.bf16.gmra.mxu0 %v214
    %v423 = vpop.f32.mrf.mxu0
    %v424 = vadd.f32 %v191, %v423
    %v425 = vpop.f32.mrf.mxu0
    %426 = vdwg.mxu0
    %427 = vmatpush.bf16.msra.mxu0 %v365
    %428 = vmatpush.bf16.msra.mxu0 %v364
    %429 = vmatpush.bf16.msra.mxu0 %v363
    %430 = vmatpush.bf16.msra.mxu0 %v362
    %431 = vmatpush.bf16.msra.mxu0 %v361
    %432 = vmatpush.bf16.msra.mxu0 %v360
    %433 = vmatpush.bf16.msra.mxu0 %v359
    %434 = vmatpush.bf16.msra.mxu0 %v358
    %435 = vmatmul.bf16.gmra.mxu0 %v215
    %v436 = vpop.f32.mrf.mxu0
    %v437 = vadd.f32 %v424, %v436
    %v438 = vpop.f32.mrf.mxu0
    %439 = vdwg.mxu0
    %440 = vmatpush.bf16.msra.mxu0 %v373
    %441 = vmatpush.bf16.msra.mxu0 %v372
    %442 = vmatpush.bf16.msra.mxu0 %v371
    %443 = vmatpush.bf16.msra.mxu0 %v370
    %444 = vmatpush.bf16.msra.mxu0 %v369
    %445 = vmatpush.bf16.msra.mxu0 %v368
    %446 = vmatpush.bf16.msra.mxu0 %v367
    %447 = vmatpush.bf16.msra.mxu0 %v366
    %448 = vmatmul.bf16.gmra.mxu0 %v216
    %v449 = vpop.f32.mrf.mxu0
    %v450 = vadd.f32 %v437, %v449
    %v451 = vpop.f32.mrf.mxu0
    %452 = vdwg.mxu0
    %453 = vmatpush.bf16.msra.mxu0 %v381
    %454 = vmatpush.bf16.msra.mxu0 %v380
    %455 = vmatpush.bf16.msra.mxu0 %v379
    %456 = vmatpush.bf16.msra.mxu0 %v378
    %457 = vmatpush.bf16.msra.mxu0 %v377
    %458 = vmatpush.bf16.msra.mxu0 %v376
    %459 = vmatpush.bf16.msra.mxu0 %v375
    %460 = vmatpush.bf16.msra.mxu0 %v374
    %461 = vmatmul.bf16.gmra.mxu0 %v217
    %v462 = vpop.f32.mrf.mxu0
    %v463 = vadd.f32 %v450, %v462
    %v464 = vpop.f32.mrf.mxu0
    %465 = vdwg.mxu0
    %466 = vst [vmem:[#allocation2] sm:$0x3] %v463
    // Predicated region
    $region14: #{resnet18_forward.1} parent=1 // pred_check
      _
    $region15: #{resnet18_forward.1} parent=1 // pred_check_branch
      %468 = sbr.rel (0) target = $region17
    $region16: #{resnet18_forward.1} parent=1 // pred_region
      %470 = vsyncadd [#allocation3], 0
      %s472 = sshll.u32 [#allocation2], 4
      %s473 = int_to_ptr.vmem [resolvable:$true] %s472
      %s474 = sshll.u32 %s3, 4
      %s475 = int_to_ptr.hbm [resolvable:$true] %s474
      %477 = dma.vmem_to_hbm [thread:$0]  %s473, 32, %s475, [#allocation3]
    $region17: #{resnet18_forward.1} parent=1 // pred_fallthru
      _
    // Predicated region
    $region18: #{resnet18_forward.1} parent=1 // pred_check
      _
    $region19: #{resnet18_forward.1} parent=1 // pred_check_branch
      %479 = sbr.rel (0) target = $region21
    $region20: #{resnet18_forward.1} parent=1 // pred_region
      %481 = dma.done [#allocation3], 32
    $region21: #{resnet18_forward.1} parent=1 // pred_fallthru
      _
    %482 = vsyncpa [#allocation3], 1

</llo_original>
